<compile_context>
chip_gen: v5e
topology: v5e:2x2
jax: 0.10.0
libtpu: 0.0.40
codegen_flags: <defaults>
</compile_context>

<pallas_src>
import functools

import jax
import jax.numpy as jnp
from jax import lax
from jax.experimental import pallas as pl
from jax.experimental.pallas import tpu as pltpu


def _crdnn_kernel(T, B, H,
                  p_ref, weff_ref, wi_ref, wh_ref, b_ref,
                  ow_ref, ob_ref, out_ref):
    # ---- Conv2d(1, C, 3x3, pad=1) + ReLU: one lane-dense MXU matmul ----
    # p_ref rows are (t, b) time-major flattened 3x(F+2) windows with a
    # constant-1 lane; the conv taps, channel-major flatten AND the conv bias
    # were folded into weff in the wrapper, so ReLU is the only VPU op here.
    xfeat = jnp.maximum(
        jnp.dot(p_ref[...], weff_ref[...],
                preferred_element_type=jnp.float32), 0.0)         # (T*B, C*F)

    # ---- GRU input projections per gate, batched over all T*B frames ----
    gx_r = jnp.dot(xfeat, wi_ref[0],
                   preferred_element_type=jnp.float32) + b_ref[0:1, :]
    gx_z = jnp.dot(xfeat, wi_ref[1],
                   preferred_element_type=jnp.float32) + b_ref[1:2, :]
    gx_n = jnp.dot(xfeat, wi_ref[2],
                   preferred_element_type=jnp.float32) + b_ref[2:3, :]

    w_hr = wh_ref[0]                                              # (H, H)
    w_hz = wh_ref[1]
    w_hn = wh_ref[2]
    b_hn = b_ref[3:4, :]                                          # (1, H)

    # ---- GRU recurrence (PyTorch convention), fully unrolled, h in vregs ----
    h = jnp.zeros((B, H), jnp.float32)
    hs = []
    for t in range(T):                    # T is static -> full unroll
        lo = t * B                        # static sublane slice per step
        r = jax.nn.sigmoid(gx_r[lo:lo + B, :] +
                           jnp.dot(h, w_hr, preferred_element_type=jnp.float32))
        z = jax.nn.sigmoid(gx_z[lo:lo + B, :] +
                           jnp.dot(h, w_hz, preferred_element_type=jnp.float32))
        n = jnp.tanh(gx_n[lo:lo + B, :] +
                     r * (jnp.dot(h, w_hn,
                                  preferred_element_type=jnp.float32) + b_hn))
        h = (1.0 - z) * n + z * h
        hs.append(h)

    # ---- Classifier head: Linear(H, NCLS) zero-padded to 128 lanes ----
    hmat = jnp.concatenate(hs, axis=0)                            # (T*B, H)
    logits = jnp.dot(hmat, ow_ref[...],
                     preferred_element_type=jnp.float32) + ob_ref[...]
    out_ref[...] = logits.astype(out_ref.dtype)                   # lane-dense store


def vad_model_forward(feats, params):
    """feats: (B, T, F) float32 -> logits (B, T, NUM_CLASSES)."""
    B, T, F = feats.shape
    C, H, NCLS = params["C"], params["H"], params["NCLS"]
    F2 = F + 2
    K = 3 * F2                               # flattened 3-row padded window
    KPAD = ((K + 1 + 7) // 8) * 8            # sublane-align, +1 lane for bias fold
    NPAD = 128                               # lane-dense classifier output
    CF = C * F

    # ---- wrapper-side layout plumbing (tiny, one matmul-free pass) ----
    x_pad = jnp.pad(feats, ((0, 0), (1, 1), (1, 1)))              # (B, T+2, F+2)
    P = jnp.concatenate([x_pad[:, 0:T, :],
                         x_pad[:, 1:T + 1, :],
                         x_pad[:, 2:T + 2, :]], axis=-1)          # (B, T, 3*(F+2))
    P = jnp.transpose(P, (1, 0, 2)).reshape(T * B, K)             # time-major rows
    # Constant-1 lane at index K folds the conv bias into the conv matmul.
    P = jnp.concatenate(
        [P, jnp.ones((T * B, 1), jnp.float32),
         jnp.zeros((T * B, KPAD - K - 1), jnp.float32)], axis=1)  # (T*B, KPAD)

    # Fold the 3x3 conv (tap order i*3+j) + channel-major (c*F+f) flatten into
    # one (KPAD, C*F) effective weight; row K carries the per-channel bias.
    w3 = params["conv_w"].reshape(C, 3, 3)
    sel = (jnp.arange(F2)[None, :, None]
           == (jnp.arange(F)[None, None, :]
               + jnp.arange(3)[:, None, None])).astype(jnp.float32)  # (3, F2, F)
    w_eff = jnp.einsum("cij,jgf->igcf", w3, sel).reshape(K, CF)
    cb_row = jnp.repeat(params["conv_b"], F, axis=1)              # (1, C*F)
    w_eff = jnp.concatenate(
        [w_eff, cb_row, jnp.zeros((KPAD - K - 1, CF), jnp.float32)], axis=0)

    # Per-gate GRU weights (r, z, n), pre-transposed for right-multiplication.
    wih, whh = params["w_ih"], params["w_hh"]
    wi_pack = jnp.stack([wih[0:H].T, wih[H:2 * H].T, wih[2 * H:3 * H].T],
                        axis=0)                                   # (3, C*F, H)
    wh_pack = jnp.stack([whh[0:H].T, whh[H:2 * H].T, whh[2 * H:3 * H].T],
                        axis=0)                                   # (3, H, H)
    bih, bhh = params["b_ih"], params["b_hh"]
    b_pack = jnp.concatenate([bih[:, 0:H] + bhh[:, 0:H],
                              bih[:, H:2 * H] + bhh[:, H:2 * H],
                              bih[:, 2 * H:3 * H],
                              bhh[:, 2 * H:3 * H]], axis=0)       # (4, H)

    ow_pad = jnp.pad(params["out_w"], ((0, 0), (0, NPAD - NCLS))) # (H, 128)
    ob_pad = jnp.pad(params["out_b"], ((0, 0), (0, NPAD - NCLS))) # (1, 128)

    kernel = functools.partial(_crdnn_kernel, T, B, H)
    out = pl.pallas_call(
        kernel,
        out_shape=jax.ShapeDtypeStruct((T * B, NPAD), jnp.float32),
        grid=(1,),                       # whole batch in a single grid step
        in_specs=[
            pl.BlockSpec((T * B, KPAD), lambda i: (0, 0)),        # conv windows (+1 lane)
            pl.BlockSpec((KPAD, CF),    lambda i: (0, 0)),        # folded conv weight+bias
            pl.BlockSpec((3, CF, H),    lambda i: (0, 0, 0)),     # GRU W_i{r,z,n}^T
            pl.BlockSpec((3, H, H),     lambda i: (0, 0, 0)),     # GRU W_h{r,z,n}^T
            pl.BlockSpec((4, H),        lambda i: (0, 0)),        # GRU biases
            pl.BlockSpec((H, NPAD),     lambda i: (0, 0)),        # head weight (padded)
            pl.BlockSpec((1, NPAD),     lambda i: (0, 0)),        # head bias (padded)
        ],
        out_specs=pl.BlockSpec((T * B, NPAD), lambda i: (0, 0)),
        compiler_params=pltpu.CompilerParams(
            dimension_semantics=("arbitrary",)),
    )(P, w_eff, wi_pack, wh_pack, b_pack, ow_pad, ob_pad)

    # (T*B, 128) time-major -> (B, T, NCLS)
    return jnp.transpose(out.reshape(T, B, NPAD), (1, 0, 2))[:, :, :NCLS]


def init_params(key, F=16, C=8, H=32, NCLS=2):
    ks = jax.random.split(key, 8)
    s = 0.1
    return {
        "C": C, "H": H, "NCLS": NCLS,
        "conv_w": s * jax.random.normal(ks[0], (C, 9), jnp.float32),        # (C,1,3,3) flat
        "conv_b": s * jax.random.normal(ks[1], (1, C), jnp.float32),
        "w_ih":   s * jax.random.normal(ks[2], (3 * H, C * F), jnp.float32),
        "w_hh":   s * jax.random.normal(ks[3], (3 * H, H), jnp.float32),
        "b_ih":   s * jax.random.normal(ks[4], (1, 3 * H), jnp.float32),
        "b_hh":   s * jax.random.normal(ks[5], (1, 3 * H), jnp.float32),
        "out_w":  s * jax.random.normal(ks[6], (H, NCLS), jnp.float32),
        "out_b":  s * jax.random.normal(ks[7], (1, NCLS), jnp.float32),
    }


def _reference_forward(feats, p):
    """Pure-JAX reference (mirrors the PyTorch semantics) for a sanity check."""
    B, T, F = feats.shape
    C, H = p["C"], p["H"]
    xp = jnp.pad(feats, ((0, 0), (1, 1), (1, 1)))
    taps = jnp.stack([xp[:, i:i + T, j:j + F]
                      for i in range(3) for j in range(3)], axis=1)  # (B,9,T,F)
    conv = jnp.einsum("ck,bktf->bctf", p["conv_w"], taps) \
        + p["conv_b"].reshape(1, C, 1, 1)
    conv = jnp.maximum(conv, 0.0)
    xfeat = jnp.transpose(conv, (0, 2, 1, 3)).reshape(B, T, C * F)

    def cell(h, x_t):
        gx = x_t @ p["w_ih"].T + p["b_ih"][0]
        gh = h @ p["w_hh"].T + p["b_hh"][0]
        r = jax.nn.sigmoid(gx[:, :H] + gh[:, :H])
        z = jax.nn.sigmoid(gx[:, H:2 * H] + gh[:, H:2 * H])
        n = jnp.tanh(gx[:, 2 * H:] + r * gh[:, 2 * H:])
        h_new = (1.0 - z) * n + z * h
        return h_new, h_new

    h0 = jnp.zeros((B, H), jnp.float32)
    _, hs = lax.scan(cell, h0, jnp.transpose(xfeat, (1, 0, 2)))   # (T,B,H)
    hs = jnp.transpose(hs, (1, 0, 2))                             # (B,T,H)
    return hs @ p["out_w"] + p["out_b"][0]


if __name__ == "__main__":
    key = jax.random.PRNGKey(0)
    k_feat, k_param = jax.random.split(key)
    B, T, F = 2, 8, 16
    feats = jax.random.normal(k_feat, (B, T, F), jnp.float32)
    params = init_params(k_param, F=F, C=8, H=32, NCLS=2)

    logits = vad_model_forward(feats, params)
    logits = jax.block_until_ready(logits)

    ref = _reference_forward(feats, params)
    assert logits.shape == (B, T, 2)
    assert jnp.allclose(logits, ref, rtol=2e-3, atol=2e-3)
    print("KERNEL_OK")
</pallas_src>

<mosaic_0001>
module attributes {stable_mosaic.version = 11 : i64} {
  func.func @_crdnn_kernel(%arg0: i32, %arg1: memref<16x56xf32, #tpu.memory_space<vmem>>, %arg2: memref<56x128xf32, #tpu.memory_space<vmem>>, %arg3: memref<3x128x32xf32, #tpu.memory_space<vmem>>, %arg4: memref<3x32x32xf32, #tpu.memory_space<vmem>>, %arg5: memref<4x32xf32, #tpu.memory_space<vmem>>, %arg6: memref<32x128xf32, #tpu.memory_space<vmem>>, %arg7: memref<1x128xf32, #tpu.memory_space<vmem>>, %arg8: memref<16x128xf32, #tpu.memory_space<vmem>>) attributes {dimension_semantics = [#tpu.dimension_semantics<arbitrary>], iteration_bounds = array<i64: 1>, scalar_prefetch = 0 : i64, scratch_operands = 0 : i64, tpu.core_type = #tpu.core_type<tc>, window_params = [{pipeline_mode = #tpu.pipeline_mode<synchronous>, transform_indices = @transform_0, window_bounds = array<i64: 16, 56>}, {pipeline_mode = #tpu.pipeline_mode<synchronous>, transform_indices = @transform_1, window_bounds = array<i64: 56, 128>}, {pipeline_mode = #tpu.pipeline_mode<synchronous>, transform_indices = @transform_2, window_bounds = array<i64: 3, 128, 32>}, {pipeline_mode = #tpu.pipeline_mode<synchronous>, transform_indices = @transform_3, window_bounds = array<i64: 3, 32, 32>}, {pipeline_mode = #tpu.pipeline_mode<synchronous>, transform_indices = @transform_4, window_bounds = array<i64: 4, 32>}, {pipeline_mode = #tpu.pipeline_mode<synchronous>, transform_indices = @transform_5, window_bounds = array<i64: 32, 128>}, {pipeline_mode = #tpu.pipeline_mode<synchronous>, transform_indices = @transform_6, window_bounds = array<i64: 1, 128>}, {pipeline_mode = #tpu.pipeline_mode<synchronous>, transform_indices = @transform_7, window_bounds = array<i64: 16, 128>}]} {
    %c0 = arith.constant 0 : index
    %c0_0 = arith.constant 0 : index
    %0 = vector.load %arg1[%c0, %c0_0] : memref<16x56xf32, #tpu.memory_space<vmem>>, vector<16x56xf32>
    %c0_1 = arith.constant 0 : index
    %c0_2 = arith.constant 0 : index
    %1 = vector.load %arg2[%c0_1, %c0_2] : memref<56x128xf32, #tpu.memory_space<vmem>>, vector<56x128xf32>
    %cst = arith.constant dense<0.000000e+00> : vector<16x128xf32>
    %2 = tpu.matmul %0, %1, %cst {dimension_numbers = #tpu.dot_dimension_numbers<[1], [0], [0], [1], [0, 0, 1, 1], [], []>} : vector<16x56xf32>, vector<56x128xf32>, vector<16x128xf32> -> vector<16x128xf32>
    %cst_3 = arith.constant 0.000000e+00 : f32
    %3 = vector.broadcast %cst_3 : f32 to vector<16x128xf32>
    %4 = arith.maximumf %2, %3 : vector<16x128xf32>
    %c0_4 = arith.constant 0 : index
    %c0_5 = arith.constant 0 : index
    %c0_6 = arith.constant 0 : index
    %5 = vector.load %arg3[%c0_4, %c0_5, %c0_6] : memref<3x128x32xf32, #tpu.memory_space<vmem>>, vector<1x128x32xf32>
    %6 = vector.shape_cast %5 : vector<1x128x32xf32> to vector<128x32xf32>
    %cst_7 = arith.constant dense<0.000000e+00> : vector<16x32xf32>
    %7 = tpu.matmul %4, %6, %cst_7 {dimension_numbers = #tpu.dot_dimension_numbers<[1], [0], [0], [1], [0, 0, 1, 1], [], []>} : vector<16x128xf32>, vector<128x32xf32>, vector<16x32xf32> -> vector<16x32xf32>
    %c0_8 = arith.constant 0 : index
    %c0_9 = arith.constant 0 : index
    %8 = vector.load %arg5[%c0_8, %c0_9] : memref<4x32xf32, #tpu.memory_space<vmem>>, vector<1x32xf32>
    %9 = vector.broadcast %8 : vector<1x32xf32> to vector<16x32xf32>
    %10 = arith.addf %7, %9 : vector<16x32xf32>
    %c1 = arith.constant 1 : index
    %c0_10 = arith.constant 0 : index
    %c0_11 = arith.constant 0 : index
    %11 = vector.load %arg3[%c1, %c0_10, %c0_11] : memref<3x128x32xf32, #tpu.memory_space<vmem>>, vector<1x128x32xf32>
    %12 = vector.shape_cast %11 : vector<1x128x32xf32> to vector<128x32xf32>
    %cst_12 = arith.constant dense<0.000000e+00> : vector<16x32xf32>
    %13 = tpu.matmul %4, %12, %cst_12 {dimension_numbers = #tpu.dot_dimension_numbers<[1], [0], [0], [1], [0, 0, 1, 1], [], []>} : vector<16x128xf32>, vector<128x32xf32>, vector<16x32xf32> -> vector<16x32xf32>
    %c1_13 = arith.constant 1 : index
    %c0_14 = arith.constant 0 : index
    %14 = vector.load %arg5[%c1_13, %c0_14] : memref<4x32xf32, #tpu.memory_space<vmem>>, vector<1x32xf32>
    %15 = vector.broadcast %14 : vector<1x32xf32> to vector<16x32xf32>
    %16 = arith.addf %13, %15 : vector<16x32xf32>
    %c2 = arith.constant 2 : index
    %c0_15 = arith.constant 0 : index
    %c0_16 = arith.constant 0 : index
    %17 = vector.load %arg3[%c2, %c0_15, %c0_16] : memref<3x128x32xf32, #tpu.memory_space<vmem>>, vector<1x128x32xf32>
    %18 = vector.shape_cast %17 : vector<1x128x32xf32> to vector<128x32xf32>
    %cst_17 = arith.constant dense<0.000000e+00> : vector<16x32xf32>
    %19 = tpu.matmul %4, %18, %cst_17 {dimension_numbers = #tpu.dot_dimension_numbers<[1], [0], [0], [1], [0, 0, 1, 1], [], []>} : vector<16x128xf32>, vector<128x32xf32>, vector<16x32xf32> -> vector<16x32xf32>
    %c2_18 = arith.constant 2 : index
    %c0_19 = arith.constant 0 : index
    %20 = vector.load %arg5[%c2_18, %c0_19] : memref<4x32xf32, #tpu.memory_space<vmem>>, vector<1x32xf32>
    %21 = vector.broadcast %20 : vector<1x32xf32> to vector<16x32xf32>
    %22 = arith.addf %19, %21 : vector<16x32xf32>
    %c0_20 = arith.constant 0 : index
    %c0_21 = arith.constant 0 : index
    %c0_22 = arith.constant 0 : index
    %23 = vector.load %arg4[%c0_20, %c0_21, %c0_22] : memref<3x32x32xf32, #tpu.memory_space<vmem>>, vector<1x32x32xf32>
    %24 = vector.shape_cast %23 : vector<1x32x32xf32> to vector<32x32xf32>
    %c1_23 = arith.constant 1 : index
    %c0_24 = arith.constant 0 : index
    %c0_25 = arith.constant 0 : index
    %25 = vector.load %arg4[%c1_23, %c0_24, %c0_25] : memref<3x32x32xf32, #tpu.memory_space<vmem>>, vector<1x32x32xf32>
    %26 = vector.shape_cast %25 : vector<1x32x32xf32> to vector<32x32xf32>
    %c2_26 = arith.constant 2 : index
    %c0_27 = arith.constant 0 : index
    %c0_28 = arith.constant 0 : index
    %27 = vector.load %arg4[%c2_26, %c0_27, %c0_28] : memref<3x32x32xf32, #tpu.memory_space<vmem>>, vector<1x32x32xf32>
    %28 = vector.shape_cast %27 : vector<1x32x32xf32> to vector<32x32xf32>
    %c3 = arith.constant 3 : index
    %c0_29 = arith.constant 0 : index
    %29 = vector.load %arg5[%c3, %c0_29] : memref<4x32xf32, #tpu.memory_space<vmem>>, vector<1x32xf32>
    %cst_30 = arith.constant 0.000000e+00 : f32
    %30 = vector.broadcast %cst_30 : f32 to vector<2x32xf32>
    %31 = vector.extract_strided_slice %10 {offsets = [0, 0], sizes = [2, 32], strides = [1, 1]} : vector<16x32xf32> to vector<2x32xf32>
    %cst_31 = arith.constant dense<0.000000e+00> : vector<2x32xf32>
    %32 = tpu.matmul %30, %24, %cst_31 {dimension_numbers = #tpu.dot_dimension_numbers<[1], [0], [0], [1], [0, 0, 1, 1], [], []>} : vector<2x32xf32>, vector<32x32xf32>, vector<2x32xf32> -> vector<2x32xf32>
    %33 = arith.addf %31, %32 : vector<2x32xf32>
    %34 = arith.negf %33 : vector<2x32xf32>
    %35 = math.exp %34 : vector<2x32xf32>
    %cst_32 = arith.constant 1.000000e+00 : f32
    %36 = vector.broadcast %cst_32 : f32 to vector<2x32xf32>
    %37 = arith.addf %36, %35 : vector<2x32xf32>
    %38 = arith.divf %36, %37 : vector<2x32xf32>
    %39 = vector.extract_strided_slice %16 {offsets = [0, 0], sizes = [2, 32], strides = [1, 1]} : vector<16x32xf32> to vector<2x32xf32>
    %cst_33 = arith.constant dense<0.000000e+00> : vector<2x32xf32>
    %40 = tpu.matmul %30, %26, %cst_33 {dimension_numbers = #tpu.dot_dimension_numbers<[1], [0], [0], [1], [0, 0, 1, 1], [], []>} : vector<2x32xf32>, vector<32x32xf32>, vector<2x32xf32> -> vector<2x32xf32>
    %41 = arith.addf %39, %40 : vector<2x32xf32>
    %42 = arith.negf %41 : vector<2x32xf32>
    %43 = math.exp %42 : vector<2x32xf32>
    %cst_34 = arith.constant 1.000000e+00 : f32
    %44 = vector.broadcast %cst_34 : f32 to vector<2x32xf32>
    %45 = arith.addf %44, %43 : vector<2x32xf32>
    %46 = arith.divf %44, %45 : vector<2x32xf32>
    %47 = vector.extract_strided_slice %22 {offsets = [0, 0], sizes = [2, 32], strides = [1, 1]} : vector<16x32xf32> to vector<2x32xf32>
    %cst_35 = arith.constant dense<0.000000e+00> : vector<2x32xf32>
    %48 = tpu.matmul %30, %28, %cst_35 {dimension_numbers = #tpu.dot_dimension_numbers<[1], [0], [0], [1], [0, 0, 1, 1], [], []>} : vector<2x32xf32>, vector<32x32xf32>, vector<2x32xf32> -> vector<2x32xf32>
    %49 = vector.broadcast %29 : vector<1x32xf32> to vector<2x32xf32>
    %50 = arith.addf %48, %49 : vector<2x32xf32>
    %51 = arith.mulf %38, %50 : vector<2x32xf32>
    %52 = arith.addf %47, %51 : vector<2x32xf32>
    %53 = math.tanh %52 : vector<2x32xf32>
    %cst_36 = arith.constant 1.000000e+00 : f32
    %54 = vector.broadcast %cst_36 : f32 to vector<2x32xf32>
    %55 = arith.subf %54, %46 : vector<2x32xf32>
    %56 = arith.mulf %55, %53 : vector<2x32xf32>
    %57 = arith.mulf %46, %30 : vector<2x32xf32>
    %58 = arith.addf %56, %57 : vector<2x32xf32>
    %59 = vector.extract_strided_slice %10 {offsets = [2, 0], sizes = [2, 32], strides = [1, 1]} : vector<16x32xf32> to vector<2x32xf32>
    %cst_37 = arith.constant dense<0.000000e+00> : vector<2x32xf32>
    %60 = tpu.matmul %58, %24, %cst_37 {dimension_numbers = #tpu.dot_dimension_numbers<[1], [0], [0], [1], [0, 0, 1, 1], [], []>} : vector<2x32xf32>, vector<32x32xf32>, vector<2x32xf32> -> vector<2x32xf32>
    %61 = arith.addf %59, %60 : vector<2x32xf32>
    %62 = arith.negf %61 : vector<2x32xf32>
    %63 = math.exp %62 : vector<2x32xf32>
    %cst_38 = arith.constant 1.000000e+00 : f32
    %64 = vector.broadcast %cst_38 : f32 to vector<2x32xf32>
    %65 = arith.addf %64, %63 : vector<2x32xf32>
    %66 = arith.divf %64, %65 : vector<2x32xf32>
    %67 = vector.extract_strided_slice %16 {offsets = [2, 0], sizes = [2, 32], strides = [1, 1]} : vector<16x32xf32> to vector<2x32xf32>
    %cst_39 = arith.constant dense<0.000000e+00> : vector<2x32xf32>
    %68 = tpu.matmul %58, %26, %cst_39 {dimension_numbers = #tpu.dot_dimension_numbers<[1], [0], [0], [1], [0, 0, 1, 1], [], []>} : vector<2x32xf32>, vector<32x32xf32>, vector<2x32xf32> -> vector<2x32xf32>
    %69 = arith.addf %67, %68 : vector<2x32xf32>
    %70 = arith.negf %69 : vector<2x32xf32>
    %71 = math.exp %70 : vector<2x32xf32>
    %cst_40 = arith.constant 1.000000e+00 : f32
    %72 = vector.broadcast %cst_40 : f32 to vector<2x32xf32>
    %73 = arith.addf %72, %71 : vector<2x32xf32>
    %74 = arith.divf %72, %73 : vector<2x32xf32>
    %75 = vector.extract_strided_slice %22 {offsets = [2, 0], sizes = [2, 32], strides = [1, 1]} : vector<16x32xf32> to vector<2x32xf32>
    %cst_41 = arith.constant dense<0.000000e+00> : vector<2x32xf32>
    %76 = tpu.matmul %58, %28, %cst_41 {dimension_numbers = #tpu.dot_dimension_numbers<[1], [0], [0], [1], [0, 0, 1, 1], [], []>} : vector<2x32xf32>, vector<32x32xf32>, vector<2x32xf32> -> vector<2x32xf32>
    %77 = vector.broadcast %29 : vector<1x32xf32> to vector<2x32xf32>
    %78 = arith.addf %76, %77 : vector<2x32xf32>
    %79 = arith.mulf %66, %78 : vector<2x32xf32>
    %80 = arith.addf %75, %79 : vector<2x32xf32>
    %81 = math.tanh %80 : vector<2x32xf32>
    %cst_42 = arith.constant 1.000000e+00 : f32
    %82 = vector.broadcast %cst_42 : f32 to vector<2x32xf32>
    %83 = arith.subf %82, %74 : vector<2x32xf32>
    %84 = arith.mulf %83, %81 : vector<2x32xf32>
    %85 = arith.mulf %74, %58 : vector<2x32xf32>
    %86 = arith.addf %84, %85 : vector<2x32xf32>
    %87 = vector.extract_strided_slice %10 {offsets = [4, 0], sizes = [2, 32], strides = [1, 1]} : vector<16x32xf32> to vector<2x32xf32>
    %cst_43 = arith.constant dense<0.000000e+00> : vector<2x32xf32>
    %88 = tpu.matmul %86, %24, %cst_43 {dimension_numbers = #tpu.dot_dimension_numbers<[1], [0], [0], [1], [0, 0, 1, 1], [], []>} : vector<2x32xf32>, vector<32x32xf32>, vector<2x32xf32> -> vector<2x32xf32>
    %89 = arith.addf %87, %88 : vector<2x32xf32>
    %90 = arith.negf %89 : vector<2x32xf32>
    %91 = math.exp %90 : vector<2x32xf32>
    %cst_44 = arith.constant 1.000000e+00 : f32
    %92 = vector.broadcast %cst_44 : f32 to vector<2x32xf32>
    %93 = arith.addf %92, %91 : vector<2x32xf32>
    %94 = arith.divf %92, %93 : vector<2x32xf32>
    %95 = vector.extract_strided_slice %16 {offsets = [4, 0], sizes = [2, 32], strides = [1, 1]} : vector<16x32xf32> to vector<2x32xf32>
    %cst_45 = arith.constant dense<0.000000e+00> : vector<2x32xf32>
    %96 = tpu.matmul %86, %26, %cst_45 {dimension_numbers = #tpu.dot_dimension_numbers<[1], [0], [0], [1], [0, 0, 1, 1], [], []>} : vector<2x32xf32>, vector<32x32xf32>, vector<2x32xf32> -> vector<2x32xf32>
    %97 = arith.addf %95, %96 : vector<2x32xf32>
    %98 = arith.negf %97 : vector<2x32xf32>
    %99 = math.exp %98 : vector<2x32xf32>
    %cst_46 = arith.constant 1.000000e+00 : f32
    %100 = vector.broadcast %cst_46 : f32 to vector<2x32xf32>
    %101 = arith.addf %100, %99 : vector<2x32xf32>
    %102 = arith.divf %100, %101 : vector<2x32xf32>
    %103 = vector.extract_strided_slice %22 {offsets = [4, 0], sizes = [2, 32], strides = [1, 1]} : vector<16x32xf32> to vector<2x32xf32>
    %cst_47 = arith.constant dense<0.000000e+00> : vector<2x32xf32>
    %104 = tpu.matmul %86, %28, %cst_47 {dimension_numbers = #tpu.dot_dimension_numbers<[1], [0], [0], [1], [0, 0, 1, 1], [], []>} : vector<2x32xf32>, vector<32x32xf32>, vector<2x32xf32> -> vector<2x32xf32>
    %105 = vector.broadcast %29 : vector<1x32xf32> to vector<2x32xf32>
    %106 = arith.addf %104, %105 : vector<2x32xf32>
    %107 = arith.mulf %94, %106 : vector<2x32xf32>
    %108 = arith.addf %103, %107 : vector<2x32xf32>
    %109 = math.tanh %108 : vector<2x32xf32>
    %cst_48 = arith.constant 1.000000e+00 : f32
    %110 = vector.broadcast %cst_48 : f32 to vector<2x32xf32>
    %111 = arith.subf %110, %102 : vector<2x32xf32>
    %112 = arith.mulf %111, %109 : vector<2x32xf32>
    %113 = arith.mulf %102, %86 : vector<2x32xf32>
    %114 = arith.addf %112, %113 : vector<2x32xf32>
    %115 = vector.extract_strided_slice %10 {offsets = [6, 0], sizes = [2, 32], strides = [1, 1]} : vector<16x32xf32> to vector<2x32xf32>
    %cst_49 = arith.constant dense<0.000000e+00> : vector<2x32xf32>
    %116 = tpu.matmul %114, %24, %cst_49 {dimension_numbers = #tpu.dot_dimension_numbers<[1], [0], [0], [1], [0, 0, 1, 1], [], []>} : vector<2x32xf32>, vector<32x32xf32>, vector<2x32xf32> -> vector<2x32xf32>
    %117 = arith.addf %115, %116 : vector<2x32xf32>
    %118 = arith.negf %117 : vector<2x32xf32>
    %119 = math.exp %118 : vector<2x32xf32>
    %cst_50 = arith.constant 1.000000e+00 : f32
    %120 = vector.broadcast %cst_50 : f32 to vector<2x32xf32>
    %121 = arith.addf %120, %119 : vector<2x32xf32>
    %122 = arith.divf %120, %121 : vector<2x32xf32>
    %123 = vector.extract_strided_slice %16 {offsets = [6, 0], sizes = [2, 32], strides = [1, 1]} : vector<16x32xf32> to vector<2x32xf32>
    %cst_51 = arith.constant dense<0.000000e+00> : vector<2x32xf32>
    %124 = tpu.matmul %114, %26, %cst_51 {dimension_numbers = #tpu.dot_dimension_numbers<[1], [0], [0], [1], [0, 0, 1, 1], [], []>} : vector<2x32xf32>, vector<32x32xf32>, vector<2x32xf32> -> vector<2x32xf32>
    %125 = arith.addf %123, %124 : vector<2x32xf32>
    %126 = arith.negf %125 : vector<2x32xf32>
    %127 = math.exp %126 : vector<2x32xf32>
    %cst_52 = arith.constant 1.000000e+00 : f32
    %128 = vector.broadcast %cst_52 : f32 to vector<2x32xf32>
    %129 = arith.addf %128, %127 : vector<2x32xf32>
    %130 = arith.divf %128, %129 : vector<2x32xf32>
    %131 = vector.extract_strided_slice %22 {offsets = [6, 0], sizes = [2, 32], strides = [1, 1]} : vector<16x32xf32> to vector<2x32xf32>
    %cst_53 = arith.constant dense<0.000000e+00> : vector<2x32xf32>
    %132 = tpu.matmul %114, %28, %cst_53 {dimension_numbers = #tpu.dot_dimension_numbers<[1], [0], [0], [1], [0, 0, 1, 1], [], []>} : vector<2x32xf32>, vector<32x32xf32>, vector<2x32xf32> -> vector<2x32xf32>
    %133 = vector.broadcast %29 : vector<1x32xf32> to vector<2x32xf32>
    %134 = arith.addf %132, %133 : vector<2x32xf32>
    %135 = arith.mulf %122, %134 : vector<2x32xf32>
    %136 = arith.addf %131, %135 : vector<2x32xf32>
    %137 = math.tanh %136 : vector<2x32xf32>
    %cst_54 = arith.constant 1.000000e+00 : f32
    %138 = vector.broadcast %cst_54 : f32 to vector<2x32xf32>
    %139 = arith.subf %138, %130 : vector<2x32xf32>
    %140 = arith.mulf %139, %137 : vector<2x32xf32>
    %141 = arith.mulf %130, %114 : vector<2x32xf32>
    %142 = arith.addf %140, %141 : vector<2x32xf32>
    %143 = vector.extract_strided_slice %10 {offsets = [8, 0], sizes = [2, 32], strides = [1, 1]} : vector<16x32xf32> to vector<2x32xf32>
    %cst_55 = arith.constant dense<0.000000e+00> : vector<2x32xf32>
    %144 = tpu.matmul %142, %24, %cst_55 {dimension_numbers = #tpu.dot_dimension_numbers<[1], [0], [0], [1], [0, 0, 1, 1], [], []>} : vector<2x32xf32>, vector<32x32xf32>, vector<2x32xf32> -> vector<2x32xf32>
    %145 = arith.addf %143, %144 : vector<2x32xf32>
    %146 = arith.negf %145 : vector<2x32xf32>
    %147 = math.exp %146 : vector<2x32xf32>
    %cst_56 = arith.constant 1.000000e+00 : f32
    %148 = vector.broadcast %cst_56 : f32 to vector<2x32xf32>
    %149 = arith.addf %148, %147 : vector<2x32xf32>
    %150 = arith.divf %148, %149 : vector<2x32xf32>
    %151 = vector.extract_strided_slice %16 {offsets = [8, 0], sizes = [2, 32], strides = [1, 1]} : vector<16x32xf32> to vector<2x32xf32>
    %cst_57 = arith.constant dense<0.000000e+00> : vector<2x32xf32>
    %152 = tpu.matmul %142, %26, %cst_57 {dimension_numbers = #tpu.dot_dimension_numbers<[1], [0], [0], [1], [0, 0, 1, 1], [], []>} : vector<2x32xf32>, vector<32x32xf32>, vector<2x32xf32> -> vector<2x32xf32>
    %153 = arith.addf %151, %152 : vector<2x32xf32>
    %154 = arith.negf %153 : vector<2x32xf32>
    %155 = math.exp %154 : vector<2x32xf32>
    %cst_58 = arith.constant 1.000000e+00 : f32
    %156 = vector.broadcast %cst_58 : f32 to vector<2x32xf32>
    %157 = arith.addf %156, %155 : vector<2x32xf32>
    %158 = arith.divf %156, %157 : vector<2x32xf32>
    %159 = vector.extract_strided_slice %22 {offsets = [8, 0], sizes = [2, 32], strides = [1, 1]} : vector<16x32xf32> to vector<2x32xf32>
    %cst_59 = arith.constant dense<0.000000e+00> : vector<2x32xf32>
    %160 = tpu.matmul %142, %28, %cst_59 {dimension_numbers = #tpu.dot_dimension_numbers<[1], [0], [0], [1], [0, 0, 1, 1], [], []>} : vector<2x32xf32>, vector<32x32xf32>, vector<2x32xf32> -> vector<2x32xf32>
    %161 = vector.broadcast %29 : vector<1x32xf32> to vector<2x32xf32>
    %162 = arith.addf %160, %161 : vector<2x32xf32>
    %163 = arith.mulf %150, %162 : vector<2x32xf32>
    %164 = arith.addf %159, %163 : vector<2x32xf32>
    %165 = math.tanh %164 : vector<2x32xf32>
    %cst_60 = arith.constant 1.000000e+00 : f32
    %166 = vector.broadcast %cst_60 : f32 to vector<2x32xf32>
    %167 = arith.subf %166, %158 : vector<2x32xf32>
    %168 = arith.mulf %167, %165 : vector<2x32xf32>
    %169 = arith.mulf %158, %142 : vector<2x32xf32>
    %170 = arith.addf %168, %169 : vector<2x32xf32>
    %171 = vector.extract_strided_slice %10 {offsets = [10, 0], sizes = [2, 32], strides = [1, 1]} : vector<16x32xf32> to vector<2x32xf32>
    %cst_61 = arith.constant dense<0.000000e+00> : vector<2x32xf32>
    %172 = tpu.matmul %170, %24, %cst_61 {dimension_numbers = #tpu.dot_dimension_numbers<[1], [0], [0], [1], [0, 0, 1, 1], [], []>} : vector<2x32xf32>, vector<32x32xf32>, vector<2x32xf32> -> vector<2x32xf32>
    %173 = arith.addf %171, %172 : vector<2x32xf32>
    %174 = arith.negf %173 : vector<2x32xf32>
    %175 = math.exp %174 : vector<2x32xf32>
    %cst_62 = arith.constant 1.000000e+00 : f32
    %176 = vector.broadcast %cst_62 : f32 to vector<2x32xf32>
    %177 = arith.addf %176, %175 : vector<2x32xf32>
    %178 = arith.divf %176, %177 : vector<2x32xf32>
    %179 = vector.extract_strided_slice %16 {offsets = [10, 0], sizes = [2, 32], strides = [1, 1]} : vector<16x32xf32> to vector<2x32xf32>
    %cst_63 = arith.constant dense<0.000000e+00> : vector<2x32xf32>
    %180 = tpu.matmul %170, %26, %cst_63 {dimension_numbers = #tpu.dot_dimension_numbers<[1], [0], [0], [1], [0, 0, 1, 1], [], []>} : vector<2x32xf32>, vector<32x32xf32>, vector<2x32xf32> -> vector<2x32xf32>
    %181 = arith.addf %179, %180 : vector<2x32xf32>
    %182 = arith.negf %181 : vector<2x32xf32>
    %183 = math.exp %182 : vector<2x32xf32>
    %cst_64 = arith.constant 1.000000e+00 : f32
    %184 = vector.broadcast %cst_64 : f32 to vector<2x32xf32>
    %185 = arith.addf %184, %183 : vector<2x32xf32>
    %186 = arith.divf %184, %185 : vector<2x32xf32>
    %187 = vector.extract_strided_slice %22 {offsets = [10, 0], sizes = [2, 32], strides = [1, 1]} : vector<16x32xf32> to vector<2x32xf32>
    %cst_65 = arith.constant dense<0.000000e+00> : vector<2x32xf32>
    %188 = tpu.matmul %170, %28, %cst_65 {dimension_numbers = #tpu.dot_dimension_numbers<[1], [0], [0], [1], [0, 0, 1, 1], [], []>} : vector<2x32xf32>, vector<32x32xf32>, vector<2x32xf32> -> vector<2x32xf32>
    %189 = vector.broadcast %29 : vector<1x32xf32> to vector<2x32xf32>
    %190 = arith.addf %188, %189 : vector<2x32xf32>
    %191 = arith.mulf %178, %190 : vector<2x32xf32>
    %192 = arith.addf %187, %191 : vector<2x32xf32>
    %193 = math.tanh %192 : vector<2x32xf32>
    %cst_66 = arith.constant 1.000000e+00 : f32
    %194 = vector.broadcast %cst_66 : f32 to vector<2x32xf32>
    %195 = arith.subf %194, %186 : vector<2x32xf32>
    %196 = arith.mulf %195, %193 : vector<2x32xf32>
    %197 = arith.mulf %186, %170 : vector<2x32xf32>
    %198 = arith.addf %196, %197 : vector<2x32xf32>
    %199 = vector.extract_strided_slice %10 {offsets = [12, 0], sizes = [2, 32], strides = [1, 1]} : vector<16x32xf32> to vector<2x32xf32>
    %cst_67 = arith.constant dense<0.000000e+00> : vector<2x32xf32>
    %200 = tpu.matmul %198, %24, %cst_67 {dimension_numbers = #tpu.dot_dimension_numbers<[1], [0], [0], [1], [0, 0, 1, 1], [], []>} : vector<2x32xf32>, vector<32x32xf32>, vector<2x32xf32> -> vector<2x32xf32>
    %201 = arith.addf %199, %200 : vector<2x32xf32>
    %202 = arith.negf %201 : vector<2x32xf32>
    %203 = math.exp %202 : vector<2x32xf32>
    %cst_68 = arith.constant 1.000000e+00 : f32
    %204 = vector.broadcast %cst_68 : f32 to vector<2x32xf32>
    %205 = arith.addf %204, %203 : vector<2x32xf32>
    %206 = arith.divf %204, %205 : vector<2x32xf32>
    %207 = vector.extract_strided_slice %16 {offsets = [12, 0], sizes = [2, 32], strides = [1, 1]} : vector<16x32xf32> to vector<2x32xf32>
    %cst_69 = arith.constant dense<0.000000e+00> : vector<2x32xf32>
    %208 = tpu.matmul %198, %26, %cst_69 {dimension_numbers = #tpu.dot_dimension_numbers<[1], [0], [0], [1], [0, 0, 1, 1], [], []>} : vector<2x32xf32>, vector<32x32xf32>, vector<2x32xf32> -> vector<2x32xf32>
    %209 = arith.addf %207, %208 : vector<2x32xf32>
    %210 = arith.negf %209 : vector<2x32xf32>
    %211 = math.exp %210 : vector<2x32xf32>
    %cst_70 = arith.constant 1.000000e+00 : f32
    %212 = vector.broadcast %cst_70 : f32 to vector<2x32xf32>
    %213 = arith.addf %212, %211 : vector<2x32xf32>
    %214 = arith.divf %212, %213 : vector<2x32xf32>
    %215 = vector.extract_strided_slice %22 {offsets = [12, 0], sizes = [2, 32], strides = [1, 1]} : vector<16x32xf32> to vector<2x32xf32>
    %cst_71 = arith.constant dense<0.000000e+00> : vector<2x32xf32>
    %216 = tpu.matmul %198, %28, %cst_71 {dimension_numbers = #tpu.dot_dimension_numbers<[1], [0], [0], [1], [0, 0, 1, 1], [], []>} : vector<2x32xf32>, vector<32x32xf32>, vector<2x32xf32> -> vector<2x32xf32>
    %217 = vector.broadcast %29 : vector<1x32xf32> to vector<2x32xf32>
    %218 = arith.addf %216, %217 : vector<2x32xf32>
    %219 = arith.mulf %206, %218 : vector<2x32xf32>
    %220 = arith.addf %215, %219 : vector<2x32xf32>
    %221 = math.tanh %220 : vector<2x32xf32>
    %cst_72 = arith.constant 1.000000e+00 : f32
    %222 = vector.broadcast %cst_72 : f32 to vector<2x32xf32>
    %223 = arith.subf %222, %214 : vector<2x32xf32>
    %224 = arith.mulf %223, %221 : vector<2x32xf32>
    %225 = arith.mulf %214, %198 : vector<2x32xf32>
    %226 = arith.addf %224, %225 : vector<2x32xf32>
    %227 = vector.extract_strided_slice %10 {offsets = [14, 0], sizes = [2, 32], strides = [1, 1]} : vector<16x32xf32> to vector<2x32xf32>
    %cst_73 = arith.constant dense<0.000000e+00> : vector<2x32xf32>
    %228 = tpu.matmul %226, %24, %cst_73 {dimension_numbers = #tpu.dot_dimension_numbers<[1], [0], [0], [1], [0, 0, 1, 1], [], []>} : vector<2x32xf32>, vector<32x32xf32>, vector<2x32xf32> -> vector<2x32xf32>
    %229 = arith.addf %227, %228 : vector<2x32xf32>
    %230 = arith.negf %229 : vector<2x32xf32>
    %231 = math.exp %230 : vector<2x32xf32>
    %cst_74 = arith.constant 1.000000e+00 : f32
    %232 = vector.broadcast %cst_74 : f32 to vector<2x32xf32>
    %233 = arith.addf %232, %231 : vector<2x32xf32>
    %234 = arith.divf %232, %233 : vector<2x32xf32>
    %235 = vector.extract_strided_slice %16 {offsets = [14, 0], sizes = [2, 32], strides = [1, 1]} : vector<16x32xf32> to vector<2x32xf32>
    %cst_75 = arith.constant dense<0.000000e+00> : vector<2x32xf32>
    %236 = tpu.matmul %226, %26, %cst_75 {dimension_numbers = #tpu.dot_dimension_numbers<[1], [0], [0], [1], [0, 0, 1, 1], [], []>} : vector<2x32xf32>, vector<32x32xf32>, vector<2x32xf32> -> vector<2x32xf32>
    %237 = arith.addf %235, %236 : vector<2x32xf32>
    %238 = arith.negf %237 : vector<2x32xf32>
    %239 = math.exp %238 : vector<2x32xf32>
    %cst_76 = arith.constant 1.000000e+00 : f32
    %240 = vector.broadcast %cst_76 : f32 to vector<2x32xf32>
    %241 = arith.addf %240, %239 : vector<2x32xf32>
    %242 = arith.divf %240, %241 : vector<2x32xf32>
    %243 = vector.extract_strided_slice %22 {offsets = [14, 0], sizes = [2, 32], strides = [1, 1]} : vector<16x32xf32> to vector<2x32xf32>
    %cst_77 = arith.constant dense<0.000000e+00> : vector<2x32xf32>
    %244 = tpu.matmul %226, %28, %cst_77 {dimension_numbers = #tpu.dot_dimension_numbers<[1], [0], [0], [1], [0, 0, 1, 1], [], []>} : vector<2x32xf32>, vector<32x32xf32>, vector<2x32xf32> -> vector<2x32xf32>
    %245 = vector.broadcast %29 : vector<1x32xf32> to vector<2x32xf32>
    %246 = arith.addf %244, %245 : vector<2x32xf32>
    %247 = arith.mulf %234, %246 : vector<2x32xf32>
    %248 = arith.addf %243, %247 : vector<2x32xf32>
    %249 = math.tanh %248 : vector<2x32xf32>
    %cst_78 = arith.constant 1.000000e+00 : f32
    %250 = vector.broadcast %cst_78 : f32 to vector<2x32xf32>
    %251 = arith.subf %250, %242 : vector<2x32xf32>
    %252 = arith.mulf %251, %249 : vector<2x32xf32>
    %253 = arith.mulf %242, %226 : vector<2x32xf32>
    %254 = arith.addf %252, %253 : vector<2x32xf32>
    %255 = tpu.concatenate %58, %86, %114, %142, %170, %198, %226, %254 in 0 : vector<2x32xf32>, vector<2x32xf32>, vector<2x32xf32>, vector<2x32xf32>, vector<2x32xf32>, vector<2x32xf32>, vector<2x32xf32>, vector<2x32xf32> -> vector<16x32xf32>
    %c0_79 = arith.constant 0 : index
    %c0_80 = arith.constant 0 : index
    %256 = vector.load %arg6[%c0_79, %c0_80] : memref<32x128xf32, #tpu.memory_space<vmem>>, vector<32x128xf32>
    %cst_81 = arith.constant dense<0.000000e+00> : vector<16x128xf32>
    %257 = tpu.matmul %255, %256, %cst_81 {dimension_numbers = #tpu.dot_dimension_numbers<[1], [0], [0], [1], [0, 0, 1, 1], [], []>} : vector<16x32xf32>, vector<32x128xf32>, vector<16x128xf32> -> vector<16x128xf32>
    %c0_82 = arith.constant 0 : index
    %c0_83 = arith.constant 0 : index
    %258 = vector.load %arg7[%c0_82, %c0_83] : memref<1x128xf32, #tpu.memory_space<vmem>>, vector<1x128xf32>
    %259 = vector.broadcast %258 : vector<1x128xf32> to vector<16x128xf32>
    %260 = arith.addf %257, %259 : vector<16x128xf32>
    %c0_84 = arith.constant 0 : index
    %c0_85 = arith.constant 0 : index
    %261 = vector.load %arg8[%c0_84, %c0_85] : memref<16x128xf32, #tpu.memory_space<vmem>>, vector<16x128xf32>
    tpu.vector_store %arg8[%c0_84, %c0_85], %260 {strides = array<i32>} : memref<16x128xf32, #tpu.memory_space<vmem>>, vector<16x128xf32>,
    return
  }
  func.func @transform_0(%arg0: i32) -> (i32, i32) {
    %c0_i32 = arith.constant 0 : i32
    %c0_i32_0 = arith.constant 0 : i32
    %c0_i32_1 = arith.constant 0 : i32
    return %c0_i32, %c0_i32_0 : i32, i32
  }
  func.func @transform_1(%arg0: i32) -> (i32, i32) {
    %c0_i32 = arith.constant 0 : i32
    %c0_i32_0 = arith.constant 0 : i32
    %c0_i32_1 = arith.constant 0 : i32
    return %c0_i32, %c0_i32_0 : i32, i32
  }
  func.func @transform_2(%arg0: i32) -> (i32, i32, i32) {
    %c0_i32 = arith.constant 0 : i32
    %c0_i32_0 = arith.constant 0 : i32
    %c0_i32_1 = arith.constant 0 : i32
    %c0_i32_2 = arith.constant 0 : i32
    return %c0_i32, %c0_i32_0, %c0_i32_1 : i32, i32, i32
  }
  func.func @transform_3(%arg0: i32) -> (i32, i32, i32) {
    %c0_i32 = arith.constant 0 : i32
    %c0_i32_0 = arith.constant 0 : i32
    %c0_i32_1 = arith.constant 0 : i32
    %c0_i32_2 = arith.constant 0 : i32
    return %c0_i32, %c0_i32_0, %c0_i32_1 : i32, i32, i32
  }
  func.func @transform_4(%arg0: i32) -> (i32, i32) {
    %c0_i32 = arith.constant 0 : i32
    %c0_i32_0 = arith.constant 0 : i32
    %c0_i32_1 = arith.constant 0 : i32
    return %c0_i32, %c0_i32_0 : i32, i32
  }
  func.func @transform_5(%arg0: i32) -> (i32, i32) {
    %c0_i32 = arith.constant 0 : i32
    %c0_i32_0 = arith.constant 0 : i32
    %c0_i32_1 = arith.constant 0 : i32
    return %c0_i32, %c0_i32_0 : i32, i32
  }
  func.func @transform_6(%arg0: i32) -> (i32, i32) {
    %c0_i32 = arith.constant 0 : i32
    %c0_i32_0 = arith.constant 0 : i32
    %c0_i32_1 = arith.constant 0 : i32
    return %c0_i32, %c0_i32_0 : i32, i32
  }
  func.func @transform_7(%arg0: i32) -> (i32, i32) {
    %c0_i32 = arith.constant 0 : i32
    %c0_i32_0 = arith.constant 0 : i32
    %c0_i32_1 = arith.constant 0 : i32
    return %c0_i32, %c0_i32_0 : i32, i32
  }
}

</mosaic_0001>

<llo_original>
// kernel: tpu_custom_call.1
$region0: #{tpu_custom_call.1}
  #allocation0 [shape = 'u32[]', space=smem, size = 0x4, offset = 0x4, fixed_abs, tag = 'smem constant byte address 0x4 - core index']
  #allocation1 [shape = 'u32[72,128]{1,0:T(1,128)}', space=vmem, size = 0x9000, scoped, tag = 'internal scratch']
  %s0 = inlined_call_operand.vmem [shape: f32[16,56], index: 0, kind: input, shape index: {}]
  %s1 = inlined_call_operand.vmem [shape: f32[56,128], index: 1, kind: input, shape index: {}]
  %s2 = inlined_call_operand.vmem [shape: f32[3,128,32], index: 2, kind: input, shape index: {}]
  %s3 = inlined_call_operand.vmem [shape: f32[3,32,32], index: 3, kind: input, shape index: {}]
  %s4 = inlined_call_operand.vmem [shape: f32[4,32], index: 4, kind: input, shape index: {}]
  %s5 = inlined_call_operand.vmem [shape: f32[32,128], index: 5, kind: input, shape index: {}]
  %s6 = inlined_call_operand.vmem [shape: f32[1,128], index: 6, kind: input, shape index: {}]
  %s7 = inlined_call_operand.hbm [shape: f32[16,128], index: 7, kind: output, shape index: {}]
  %s8 = sld [smem:[#allocation0]]
  $region38: #{tpu_custom_call.1} parent=0
    _
  %s10 = ssub.s32 1, %s8
  %s11 = scalar_select 0, %s10, %s8
  $region1: #{tpu_custom_call.1} parent=0
    #allocation2 [shape = 'u8[8192]{0}', space=vmem, size = 0x2000, scoped, tag = 'output window, operand 0, single buffered']
    #allocation3 [shape = 's32[1]{0}', space=sflag, size = 0x4, scoped, tag = 'scoped memory for tpu_custom_call.1']
    %12 = vsyncpa [#allocation3], 0
    // Predicated region
    $region2: #{tpu_custom_call.1} parent=1 // pred_check
      _
    $region3: #{tpu_custom_call.1} parent=1 // pred_check_branch
      %14 = sbr.rel (0) target = $region5
    $region4: #{tpu_custom_call.1} parent=1 // pred_region
      _
    $region5: #{tpu_custom_call.1} parent=1 // pred_fallthru
      _
    // Predicated region
    $region6: #{tpu_custom_call.1} parent=1 // pred_check
      _
    $region7: #{tpu_custom_call.1} parent=1 // pred_check_branch
      %16 = sbr.rel (0) target = $region9
    $region8: #{tpu_custom_call.1} parent=1 // pred_region
      _
    $region9: #{tpu_custom_call.1} parent=1 // pred_fallthru
      _
    // Predicated region
    $region10: #{tpu_custom_call.1} parent=1 // pred_check
      _
    $region11: #{tpu_custom_call.1} parent=1 // pred_check_branch
      %18 = sbr.rel (0) target = $region13
    $region12: #{tpu_custom_call.1} parent=1 // pred_region
      _
    $region13: #{tpu_custom_call.1} parent=1 // pred_fallthru
      _
    // Predicated region
    $region14: #{tpu_custom_call.1} parent=1 // pred_check
      _
    $region15: #{tpu_custom_call.1} parent=1 // pred_check_branch
      %20 = sbr.rel (0) target = $region17
    $region16: #{tpu_custom_call.1} parent=1 // pred_region
      _
    $region17: #{tpu_custom_call.1} parent=1 // pred_fallthru
      _
    // Predicated region
    $region18: #{tpu_custom_call.1} parent=1 // pred_check
      _
    $region19: #{tpu_custom_call.1} parent=1 // pred_check_branch
      %22 = sbr.rel (0) target = $region21
    $region20: #{tpu_custom_call.1} parent=1 // pred_region
      _
    $region21: #{tpu_custom_call.1} parent=1 // pred_fallthru
      _
    // Predicated region
    $region22: #{tpu_custom_call.1} parent=1 // pred_check
      _
    $region23: #{tpu_custom_call.1} parent=1 // pred_check_branch
      %24 = sbr.rel (0) target = $region25
    $region24: #{tpu_custom_call.1} parent=1 // pred_region
      _
    $region25: #{tpu_custom_call.1} parent=1 // pred_fallthru
      _
    // Predicated region
    $region26: #{tpu_custom_call.1} parent=1 // pred_check
      _
    $region27: #{tpu_custom_call.1} parent=1 // pred_check_branch
      %26 = sbr.rel (0) target = $region29
    $region28: #{tpu_custom_call.1} parent=1 // pred_region
      _
    $region29: #{tpu_custom_call.1} parent=1 // pred_fallthru
      _
    %v27 = vld [vmem:[%s0] sm:$0xff]
    %v28 = vld [vmem:[%s0 + $0x8] sm:$0xff]
    %v29 = vld [vmem:[%s1] sm:$0xff]
    %v30 = vld [vmem:[%s1 + $0x8] sm:$0xff]
    %v31 = vld [vmem:[%s1 + $0x10] sm:$0xff]
    %v32 = vld [vmem:[%s1 + $0x18] sm:$0xff]
    %v33 = vld [vmem:[%s1 + $0x20] sm:$0xff]
    %v34 = vld [vmem:[%s1 + $0x28] sm:$0xff]
    %v35 = vld [vmem:[%s1 + $0x30] sm:$0xff]
    %vm36 = vcmask 457728
    %v38 = vsel %vm36, %v27, 0
    %v41 = vsel %vm36, %v28, 0
    %43 = vmatpush.msra.mxu0 0.0
    %44 = vmatpush.msra.mxu0 0.0
    %45 = vmatpush.msra.mxu0 0.0
    %46 = vmatpush.msra.mxu0 0.0
    %47 = vmatpush.msra.mxu0 0.0
    %48 = vmatpush.msra.mxu0 0.0
    %49 = vmatpush.msra.mxu0 0.0
    %50 = vmatpush.msra.mxu0 0.0
    %51 = vmatpush.msra.mxu0 0.0
    %52 = vmatpush.msra.mxu0 %v35
    %53 = vmatpush.msra.mxu0 %v34
    %54 = vmatpush.msra.mxu0 %v33
    %55 = vmatpush.msra.mxu0 %v32
    %56 = vmatpush.msra.mxu0 %v31
    %57 = vmatpush.msra.mxu0 %v30
    %58 = vmatpush.msra.mxu0 %v29
    %59 = vmatmul.f32.gmra.mxu0 %v38
    %v60 = vpop.f32.mrf.mxu0
    %v61 = vadd.f32 0.0, %v60
    %62 = vmatmul.f32.gmra.mxu0 %v41
    %v63 = vpop.f32.mrf.mxu0
    %v64 = vadd.f32 0.0, %v63
    %65 = vdwg.mxu0
    %v66 = vmax.f32 %v61, 0.0
    %v67 = vmax.f32 %v64, 0.0
    %v68 = vld [vmem:[%s2] sm:$0xff]
    %v69 = vld [vmem:[%s2 + $0x8] sm:$0xff]
    %v70 = vld [vmem:[%s2 + $0x10] sm:$0xff]
    %v71 = vld [vmem:[%s2 + $0x18] sm:$0xff]
    %v72 = vld [vmem:[%s2 + $0x20] sm:$0xff]
    %v73 = vld [vmem:[%s2 + $0x28] sm:$0xff]
    %v74 = vld [vmem:[%s2 + $0x30] sm:$0xff]
    %v75 = vld [vmem:[%s2 + $0x38] sm:$0xff]
    %v76 = vld [vmem:[%s2 + $0x40] sm:$0xff]
    %v77 = vld [vmem:[%s2 + $0x48] sm:$0xff]
    %v78 = vld [vmem:[%s2 + $0x50] sm:$0xff]
    %v79 = vld [vmem:[%s2 + $0x58] sm:$0xff]
    %v80 = vld [vmem:[%s2 + $0x60] sm:$0xff]
    %v81 = vld [vmem:[%s2 + $0x68] sm:$0xff]
    %v82 = vld [vmem:[%s2 + $0x70] sm:$0xff]
    %v83 = vld [vmem:[%s2 + $0x78] sm:$0xff]
    %v84 = vld [vmem:[%s4] sm:$0x1]
    %v85 = vperm.slane %v84, 0
    %86 = vmatpush.msra.mxu0 %v83
    %87 = vmatpush.msra.mxu0 %v82
    %88 = vmatpush.msra.mxu0 %v81
    %89 = vmatpush.msra.mxu0 %v80
    %90 = vmatpush.msra.mxu0 %v79
    %91 = vmatpush.msra.mxu0 %v78
    %92 = vmatpush.msra.mxu0 %v77
    %93 = vmatpush.msra.mxu0 %v76
    %94 = vmatpush.msra.mxu0 %v75
    %95 = vmatpush.msra.mxu0 %v74
    %96 = vmatpush.msra.mxu0 %v73
    %97 = vmatpush.msra.mxu0 %v72
    %98 = vmatpush.msra.mxu0 %v71
    %99 = vmatpush.msra.mxu0 %v70
    %100 = vmatpush.msra.mxu0 %v69
    %101 = vmatpush.msra.mxu0 %v68
    %102 = vmatmul.f32.gmra.mxu0 %v66
    %v103 = vpop.f32.mrf.mxu0
    %v104 = vadd.f32 %v85, %v103
    %105 = vmatmul.f32.gmra.mxu0 %v67
    %v106 = vpop.f32.mrf.mxu0
    %v107 = vadd.f32 %v85, %v106
    %108 = vdwg.mxu0
    %s109 = scalar_lea.vmem %s2, 128
    %v110 = vld [vmem:[%s109] sm:$0xff]
    %v111 = vld [vmem:[%s109 + $0x8] sm:$0xff]
    %v112 = vld [vmem:[%s109 + $0x10] sm:$0xff]
    %v113 = vld [vmem:[%s109 + $0x18] sm:$0xff]
    %v114 = vld [vmem:[%s109 + $0x20] sm:$0xff]
    %v115 = vld [vmem:[%s109 + $0x28] sm:$0xff]
    %v116 = vld [vmem:[%s109 + $0x30] sm:$0xff]
    %v117 = vld [vmem:[%s109 + $0x38] sm:$0xff]
    %v118 = vld [vmem:[%s109 + $0x40] sm:$0xff]
    %v119 = vld [vmem:[%s109 + $0x48] sm:$0xff]
    %v120 = vld [vmem:[%s109 + $0x50] sm:$0xff]
    %v121 = vld [vmem:[%s109 + $0x58] sm:$0xff]
    %v122 = vld [vmem:[%s109 + $0x60] sm:$0xff]
    %v123 = vld [vmem:[%s109 + $0x68] sm:$0xff]
    %v124 = vld [vmem:[%s109 + $0x70] sm:$0xff]
    %v125 = vld [vmem:[%s109 + $0x78] sm:$0xff]
    %v126 = vld [vmem:[%s4 + $0x1] sm:$0x1]
    %v127 = vperm.slane %v126, 0
    %128 = vmatpush.msra.mxu0 %v125
    %129 = vmatpush.msra.mxu0 %v124
    %130 = vmatpush.msra.mxu0 %v123
    %131 = vmatpush.msra.mxu0 %v122
    %132 = vmatpush.msra.mxu0 %v121
    %133 = vmatpush.msra.mxu0 %v120
    %134 = vmatpush.msra.mxu0 %v119
    %135 = vmatpush.msra.mxu0 %v118
    %136 = vmatpush.msra.mxu0 %v117
    %137 = vmatpush.msra.mxu0 %v116
    %138 = vmatpush.msra.mxu0 %v115
    %139 = vmatpush.msra.mxu0 %v114
    %140 = vmatpush.msra.mxu0 %v113
    %141 = vmatpush.msra.mxu0 %v112
    %142 = vmatpush.msra.mxu0 %v111
    %143 = vmatpush.msra.mxu0 %v110
    %144 = vmatmul.f32.gmra.mxu0 %v66
    %v145 = vpop.f32.mrf.mxu0
    %v146 = vadd.f32 %v127, %v145
    %147 = vmatmul.f32.gmra.mxu0 %v67
    %v148 = vpop.f32.mrf.mxu0
    %v149 = vadd.f32 %v127, %v148
    %150 = vdwg.mxu0
    %s151 = scalar_lea.vmem %s2, 256
    %v152 = vld [vmem:[%s151] sm:$0xff]
    %v153 = vld [vmem:[%s151 + $0x8] sm:$0xff]
    %v154 = vld [vmem:[%s151 + $0x10] sm:$0xff]
    %v155 = vld [vmem:[%s151 + $0x18] sm:$0xff]
    %v156 = vld [vmem:[%s151 + $0x20] sm:$0xff]
    %v157 = vld [vmem:[%s151 + $0x28] sm:$0xff]
    %v158 = vld [vmem:[%s151 + $0x30] sm:$0xff]
    %v159 = vld [vmem:[%s151 + $0x38] sm:$0xff]
    %v160 = vld [vmem:[%s151 + $0x40] sm:$0xff]
    %v161 = vld [vmem:[%s151 + $0x48] sm:$0xff]
    %v162 = vld [vmem:[%s151 + $0x50] sm:$0xff]
    %v163 = vld [vmem:[%s151 + $0x58] sm:$0xff]
    %v164 = vld [vmem:[%s151 + $0x60] sm:$0xff]
    %v165 = vld [vmem:[%s151 + $0x68] sm:$0xff]
    %v166 = vld [vmem:[%s151 + $0x70] sm:$0xff]
    %v167 = vld [vmem:[%s151 + $0x78] sm:$0xff]
    %v168 = vld [vmem:[%s4 + $0x2] sm:$0x1]
    %v169 = vperm.slane %v168, 0
    %170 = vmatpush.msra.mxu0 %v167
    %171 = vmatpush.msra.mxu0 %v166
    %172 = vmatpush.msra.mxu0 %v165
    %173 = vmatpush.msra.mxu0 %v164
    %174 = vmatpush.msra.mxu0 %v163
    %175 = vmatpush.msra.mxu0 %v162
    %176 = vmatpush.msra.mxu0 %v161
    %177 = vmatpush.msra.mxu0 %v160
    %178 = vmatpush.msra.mxu0 %v159
    %179 = vmatpush.msra.mxu0 %v158
    %180 = vmatpush.msra.mxu0 %v157
    %181 = vmatpush.msra.mxu0 %v156
    %182 = vmatpush.msra.mxu0 %v155
    %183 = vmatpush.msra.mxu0 %v154
    %184 = vmatpush.msra.mxu0 %v153
    %185 = vmatpush.msra.mxu0 %v152
    %186 = vmatmul.f32.gmra.mxu0 %v66
    %v187 = vpop.f32.mrf.mxu0
    %v188 = vadd.f32 %v169, %v187
    %189 = vmatmul.f32.gmra.mxu0 %v67
    %v190 = vpop.f32.mrf.mxu0
    %v191 = vadd.f32 %v169, %v190
    %192 = vdwg.mxu0
    %v193 = vld [vmem:[%s3] sm:$0xff]
    %v194 = vld [vmem:[%s3 + $0x8] sm:$0xff]
    %v195 = vld [vmem:[%s3 + $0x10] sm:$0xff]
    %v196 = vld [vmem:[%s3 + $0x18] sm:$0xff]
    %s197 = scalar_lea.vmem %s3, 32
    %v198 = vld [vmem:[%s197] sm:$0xff]
    %v199 = vld [vmem:[%s197 + $0x8] sm:$0xff]
    %v200 = vld [vmem:[%s197 + $0x10] sm:$0xff]
    %v201 = vld [vmem:[%s197 + $0x18] sm:$0xff]
    %s202 = scalar_lea.vmem %s3, 64
    %v203 = vld [vmem:[%s202] sm:$0xff]
    %v204 = vld [vmem:[%s202 + $0x8] sm:$0xff]
    %v205 = vld [vmem:[%s202 + $0x10] sm:$0xff]
    %v206 = vld [vmem:[%s202 + $0x18] sm:$0xff]
    %v207 = vld [vmem:[%s4 + $0x3] sm:$0x1]
    %vm208 = vcmask 261120
    %v210 = vsel %vm208, 0.0, 0
    %212 = vmatpush.msra.mxu0 0.0
    %213 = vmatpush.msra.mxu0 0.0
    %214 = vmatpush.msra.mxu0 0.0
    %215 = vmatpush.msra.mxu0 0.0
    %216 = vmatpush.msra.mxu0 0.0
    %217 = vmatpush.msra.mxu0 0.0
    %218 = vmatpush.msra.mxu0 0.0
    %219 = vmatpush.msra.mxu0 0.0
    %220 = vmatpush.msra.mxu0 0.0
    %221 = vmatpush.msra.mxu0 0.0
    %222 = vmatpush.msra.mxu0 0.0
    %223 = vmatpush.msra.mxu0 0.0
    %224 = vmatpush.msra.mxu0 %v196
    %225 = vmatpush.msra.mxu0 %v195
    %226 = vmatpush.msra.mxu0 %v194
    %227 = vmatpush.msra.mxu0 %v193
    %228 = vmatmul.f32.gmra.mxu0 %v210
    %v229 = vpop.f32.mrf.mxu0
    %v230 = vadd.f32 0.0, %v229
    %231 = vdwg.mxu0
    %v232 = vadd.f32 %v104, %v230
    %v233 = vxor.u32 %v232, 2147483648
    %v234 = vmul.f32 %v233, 1.442695
    %v235 = vpow.pop %v234
    %v236 = vadd.f32 %v235, 1.0
    %v237 = vrcp.pop %v236
    %v238 = vmul.f32 %v236, %v237
    %v239 = vsub.f32 1.0, %v238
    %v240 = vmul.f32 %v237, %v239
    %v241 = vadd.f32 %v237, %v240
    %vm242 = vweird.f32 %v236
    %vm243 = vweird.f32 %v237
    %vm244 = vmor %vm242, %vm243
    %v245 = vsel %vm244, %v237, %v241
    %v246 = vand.u32 2147483647, %v236
    %vm247 = vcmp.eq.f32.partialorder %v246, 8.507059e+37
    %v248 = vand.u32 %v236, 2147483648
    %v249 = vor.u32 1.1754944e-38, %v248
    %v250 = vsel %vm247, %v249, %v245
    %v251 = vmul.f32 1.0, %v250
    %252 = vmatpush.msra.mxu0 0.0
    %253 = vmatpush.msra.mxu0 0.0
    %254 = vmatpush.msra.mxu0 0.0
    %255 = vmatpush.msra.mxu0 0.0
    %256 = vmatpush.msra.mxu0 0.0
    %257 = vmatpush.msra.mxu0 0.0
    %258 = vmatpush.msra.mxu0 0.0
    %259 = vmatpush.msra.mxu0 0.0
    %260 = vmatpush.msra.mxu0 0.0
    %261 = vmatpush.msra.mxu0 0.0
    %262 = vmatpush.msra.mxu0 0.0
    %263 = vmatpush.msra.mxu0 0.0
    %264 = vmatpush.msra.mxu0 %v201
    %265 = vmatpush.msra.mxu0 %v200
    %266 = vmatpush.msra.mxu0 %v199
    %267 = vmatpush.msra.mxu0 %v198
    %268 = vmatmul.f32.gmra.mxu0 %v210
    %v269 = vpop.f32.mrf.mxu0
    %v270 = vadd.f32 0.0, %v269
    %271 = vdwg.mxu0
    %v272 = vadd.f32 %v146, %v270
    %v273 = vxor.u32 %v272, 2147483648
    %v274 = vmul.f32 %v273, 1.442695
    %v275 = vpow.pop %v274
    %v276 = vadd.f32 %v275, 1.0
    %v277 = vrcp.pop %v276
    %v278 = vmul.f32 %v276, %v277
    %v279 = vsub.f32 1.0, %v278
    %v280 = vmul.f32 %v277, %v279
    %v281 = vadd.f32 %v277, %v280
    %vm282 = vweird.f32 %v276
    %vm283 = vweird.f32 %v277
    %vm284 = vmor %vm282, %vm283
    %v285 = vsel %vm284, %v277, %v281
    %v286 = vand.u32 2147483647, %v276
    %vm287 = vcmp.eq.f32.partialorder %v286, 8.507059e+37
    %v288 = vand.u32 %v276, 2147483648
    %v289 = vor.u32 1.1754944e-38, %v288
    %v290 = vsel %vm287, %v289, %v285
    %v291 = vmul.f32 1.0, %v290
    %v292 = vperm.slane %v207, 0
    %293 = vmatpush.msra.mxu0 0.0
    %294 = vmatpush.msra.mxu0 0.0
    %295 = vmatpush.msra.mxu0 0.0
    %296 = vmatpush.msra.mxu0 0.0
    %297 = vmatpush.msra.mxu0 0.0
    %298 = vmatpush.msra.mxu0 0.0
    %299 = vmatpush.msra.mxu0 0.0
    %300 = vmatpush.msra.mxu0 0.0
    %301 = vmatpush.msra.mxu0 0.0
    %302 = vmatpush.msra.mxu0 0.0
    %303 = vmatpush.msra.mxu0 0.0
    %304 = vmatpush.msra.mxu0 0.0
    %305 = vmatpush.msra.mxu0 %v206
    %306 = vmatpush.msra.mxu0 %v205
    %307 = vmatpush.msra.mxu0 %v204
    %308 = vmatpush.msra.mxu0 %v203
    %309 = vmatmul.f32.gmra.mxu0 %v210
    %v310 = vpop.f32.mrf.mxu0
    %v311 = vadd.f32 %v292, %v310
    %312 = vdwg.mxu0
    %v313 = vmul.f32 %v251, %v311
    %v314 = vadd.f32 %v188, %v313
    %v315 = vtanh.pop %v314
    %v316 = vsub.f32 1.0, %v291
    %v317 = vmul.f32 %v316, %v315
    %v318 = vmul.f32 %v291, 0.0
    %v319 = vadd.f32 %v317, %v318
    %v321 = vsel %vm208, %v319, 0
    %323 = vmatpush.msra.mxu0 0.0
    %324 = vmatpush.msra.mxu0 0.0
    %325 = vmatpush.msra.mxu0 0.0
    %326 = vmatpush.msra.mxu0 0.0
    %327 = vmatpush.msra.mxu0 0.0
    %328 = vmatpush.msra.mxu0 0.0
    %329 = vmatpush.msra.mxu0 0.0
    %330 = vmatpush.msra.mxu0 0.0
    %331 = vmatpush.msra.mxu0 0.0
    %332 = vmatpush.msra.mxu0 0.0
    %333 = vmatpush.msra.mxu0 0.0
    %334 = vmatpush.msra.mxu0 0.0
    %335 = vmatpush.msra.mxu0 %v196
    %336 = vmatpush.msra.mxu0 %v195
    %337 = vmatpush.msra.mxu0 %v194
    %338 = vmatpush.msra.mxu0 %v193
    %339 = vmatmul.f32.gmra.mxu0 %v321
    %v340 = vpop.f32.mrf.mxu0
    %v341 = vadd.f32 0.0, %v340
    %342 = vdwg.mxu0
    %v344 = vrot.slane %v341, 6
    %v346 = vadd.f32 %v104, %v344
    %v347 = vxor.u32 %v346, 2147483648
    %v348 = vmul.f32 %v347, 1.442695
    %v349 = vpow.pop %v348
    %v350 = vadd.f32 %v349, 1.0
    %v351 = vrcp.pop %v350
    %v352 = vmul.f32 %v350, %v351
    %v353 = vsub.f32 1.0, %v352
    %v354 = vmul.f32 %v351, %v353
    %v355 = vadd.f32 %v351, %v354
    %vm356 = vweird.f32 %v350
    %vm357 = vweird.f32 %v351
    %vm358 = vmor %vm356, %vm357
    %v359 = vsel %vm358, %v351, %v355
    %v360 = vand.u32 2147483647, %v350
    %vm361 = vcmp.eq.f32.partialorder %v360, 8.507059e+37
    %v362 = vand.u32 %v350, 2147483648
    %v363 = vor.u32 1.1754944e-38, %v362
    %v364 = vsel %vm361, %v363, %v359
    %v365 = vmul.f32 1.0, %v364
    %366 = vmatpush.msra.mxu0 0.0
    %367 = vmatpush.msra.mxu0 0.0
    %368 = vmatpush.msra.mxu0 0.0
    %369 = vmatpush.msra.mxu0 0.0
    %370 = vmatpush.msra.mxu0 0.0
    %371 = vmatpush.msra.mxu0 0.0
    %372 = vmatpush.msra.mxu0 0.0
    %373 = vmatpush.msra.mxu0 0.0
    %374 = vmatpush.msra.mxu0 0.0
    %375 = vmatpush.msra.mxu0 0.0
    %376 = vmatpush.msra.mxu0 0.0
    %377 = vmatpush.msra.mxu0 0.0
    %378 = vmatpush.msra.mxu0 %v201
    %379 = vmatpush.msra.mxu0 %v200
    %380 = vmatpush.msra.mxu0 %v199
    %381 = vmatpush.msra.mxu0 %v198
    %382 = vmatmul.f32.gmra.mxu0 %v321
    %v383 = vpop.f32.mrf.mxu0
    %v384 = vadd.f32 0.0, %v383
    %385 = vdwg.mxu0
    %v387 = vrot.slane %v384, 6
    %v389 = vadd.f32 %v146, %v387
    %v390 = vxor.u32 %v389, 2147483648
    %v391 = vmul.f32 %v390, 1.442695
    %v392 = vpow.pop %v391
    %v393 = vadd.f32 %v392, 1.0
    %v394 = vrcp.pop %v393
    %v395 = vmul.f32 %v393, %v394
    %v396 = vsub.f32 1.0, %v395
    %v397 = vmul.f32 %v394, %v396
    %v398 = vadd.f32 %v394, %v397
    %vm399 = vweird.f32 %v393
    %vm400 = vweird.f32 %v394
    %vm401 = vmor %vm399, %vm400
    %v402 = vsel %vm401, %v394, %v398
    %v403 = vand.u32 2147483647, %v393
    %vm404 = vcmp.eq.f32.partialorder %v403, 8.507059e+37
    %v405 = vand.u32 %v393, 2147483648
    %v406 = vor.u32 1.1754944e-38, %v405
    %v407 = vsel %vm404, %v406, %v402
    %v408 = vmul.f32 1.0, %v407
    %409 = vmatpush.msra.mxu0 0.0
    %410 = vmatpush.msra.mxu0 0.0
    %411 = vmatpush.msra.mxu0 0.0
    %412 = vmatpush.msra.mxu0 0.0
    %413 = vmatpush.msra.mxu0 0.0
    %414 = vmatpush.msra.mxu0 0.0
    %415 = vmatpush.msra.mxu0 0.0
    %416 = vmatpush.msra.mxu0 0.0
    %417 = vmatpush.msra.mxu0 0.0
    %418 = vmatpush.msra.mxu0 0.0
    %419 = vmatpush.msra.mxu0 0.0
    %420 = vmatpush.msra.mxu0 0.0
    %421 = vmatpush.msra.mxu0 %v206
    %422 = vmatpush.msra.mxu0 %v205
    %423 = vmatpush.msra.mxu0 %v204
    %424 = vmatpush.msra.mxu0 %v203
    %425 = vmatmul.f32.gmra.mxu0 %v321
    %v426 = vpop.f32.mrf.mxu0
    %v427 = vadd.f32 %v292, %v426
    %428 = vdwg.mxu0
    %v430 = vrot.slane %v427, 6
    %v432 = vmul.f32 %v365, %v430
    %v433 = vadd.f32 %v188, %v432
    %v434 = vtanh.pop %v433
    %v435 = vsub.f32 1.0, %v408
    %v436 = vmul.f32 %v435, %v434
    %v437 = vrot.slane %v319, 6
    %v439 = vmul.f32 %v408, %v437
    %v440 = vadd.f32 %v436, %v439
    %v442 = vrot.slane %v440, 2
    %v443 = vsel %vm208, %v442, 0
    %445 = vmatpush.msra.mxu0 0.0
    %446 = vmatpush.msra.mxu0 0.0
    %447 = vmatpush.msra.mxu0 0.0
    %448 = vmatpush.msra.mxu0 0.0
    %449 = vmatpush.msra.mxu0 0.0
    %450 = vmatpush.msra.mxu0 0.0
    %451 = vmatpush.msra.mxu0 0.0
    %452 = vmatpush.msra.mxu0 0.0
    %453 = vmatpush.msra.mxu0 0.0
    %454 = vmatpush.msra.mxu0 0.0
    %455 = vmatpush.msra.mxu0 0.0
    %456 = vmatpush.msra.mxu0 0.0
    %457 = vmatpush.msra.mxu0 %v196
    %458 = vmatpush.msra.mxu0 %v195
    %459 = vmatpush.msra.mxu0 %v194
    %460 = vmatpush.msra.mxu0 %v193
    %461 = vmatmul.f32.gmra.mxu0 %v443
    %v462 = vpop.f32.mrf.mxu0
    %v463 = vadd.f32 0.0, %v462
    %464 = vdwg.mxu0
    %v466 = vrot.slane %v463, 4
    %v468 = vadd.f32 %v104, %v466
    %v469 = vxor.u32 %v468, 2147483648
    %v470 = vmul.f32 %v469, 1.442695
    %v471 = vpow.pop %v470
    %v472 = vadd.f32 %v471, 1.0
    %v473 = vrcp.pop %v472
    %v474 = vmul.f32 %v472, %v473
    %v475 = vsub.f32 1.0, %v474
    %v476 = vmul.f32 %v473, %v475
    %v477 = vadd.f32 %v473, %v476
    %vm478 = vweird.f32 %v472
    %vm479 = vweird.f32 %v473
    %vm480 = vmor %vm478, %vm479
    %v481 = vsel %vm480, %v473, %v477
    %v482 = vand.u32 2147483647, %v472
    %vm483 = vcmp.eq.f32.partialorder %v482, 8.507059e+37
    %v484 = vand.u32 %v472, 2147483648
    %v485 = vor.u32 1.1754944e-38, %v484
    %v486 = vsel %vm483, %v485, %v481
    %v487 = vmul.f32 1.0, %v486
    %488 = vmatpush.msra.mxu0 0.0
    %489 = vmatpush.msra.mxu0 0.0
    %490 = vmatpush.msra.mxu0 0.0
    %491 = vmatpush.msra.mxu0 0.0
    %492 = vmatpush.msra.mxu0 0.0
    %493 = vmatpush.msra.mxu0 0.0
    %494 = vmatpush.msra.mxu0 0.0
    %495 = vmatpush.msra.mxu0 0.0
    %496 = vmatpush.msra.mxu0 0.0
    %497 = vmatpush.msra.mxu0 0.0
    %498 = vmatpush.msra.mxu0 0.0
    %499 = vmatpush.msra.mxu0 0.0
    %500 = vmatpush.msra.mxu0 %v201
    %501 = vmatpush.msra.mxu0 %v200
    %502 = vmatpush.msra.mxu0 %v199
    %503 = vmatpush.msra.mxu0 %v198
    %504 = vmatmul.f32.gmra.mxu0 %v443
    %v505 = vpop.f32.mrf.mxu0
    %v506 = vadd.f32 0.0, %v505
    %507 = vdwg.mxu0
    %v509 = vrot.slane %v506, 4
    %v511 = vadd.f32 %v146, %v509
    %v512 = vxor.u32 %v511, 2147483648
    %v513 = vmul.f32 %v512, 1.442695
    %v514 = vpow.pop %v513
    %v515 = vadd.f32 %v514, 1.0
    %v516 = vrcp.pop %v515
    %v517 = vmul.f32 %v515, %v516
    %v518 = vsub.f32 1.0, %v517
    %v519 = vmul.f32 %v516, %v518
    %v520 = vadd.f32 %v516, %v519
    %vm521 = vweird.f32 %v515
    %vm522 = vweird.f32 %v516
    %vm523 = vmor %vm521, %vm522
    %v524 = vsel %vm523, %v516, %v520
    %v525 = vand.u32 2147483647, %v515
    %vm526 = vcmp.eq.f32.partialorder %v525, 8.507059e+37
    %v527 = vand.u32 %v515, 2147483648
    %v528 = vor.u32 1.1754944e-38, %v527
    %v529 = vsel %vm526, %v528, %v524
    %v530 = vmul.f32 1.0, %v529
    %531 = vmatpush.msra.mxu0 0.0
    %532 = vmatpush.msra.mxu0 0.0
    %533 = vmatpush.msra.mxu0 0.0
    %534 = vmatpush.msra.mxu0 0.0
    %535 = vmatpush.msra.mxu0 0.0
    %536 = vmatpush.msra.mxu0 0.0
    %537 = vmatpush.msra.mxu0 0.0
    %538 = vmatpush.msra.mxu0 0.0
    %539 = vmatpush.msra.mxu0 0.0
    %540 = vmatpush.msra.mxu0 0.0
    %541 = vmatpush.msra.mxu0 0.0
    %542 = vmatpush.msra.mxu0 0.0
    %543 = vmatpush.msra.mxu0 %v206
    %544 = vmatpush.msra.mxu0 %v205
    %545 = vmatpush.msra.mxu0 %v204
    %546 = vmatpush.msra.mxu0 %v203
    %547 = vmatmul.f32.gmra.mxu0 %v443
    %v548 = vpop.f32.mrf.mxu0
    %v549 = vadd.f32 %v292, %v548
    %550 = vdwg.mxu0
    %v552 = vrot.slane %v549, 4
    %v554 = vmul.f32 %v487, %v552
    %v555 = vadd.f32 %v188, %v554
    %v556 = vtanh.pop %v555
    %v557 = vsub.f32 1.0, %v530
    %v558 = vmul.f32 %v557, %v556
    %v559 = vrot.slane %v440, 6
    %v561 = vmul.f32 %v530, %v559
    %v562 = vadd.f32 %v558, %v561
    %v564 = vrot.slane %v562, 4
    %v565 = vsel %vm208, %v564, 0
    %567 = vmatpush.msra.mxu0 0.0
    %568 = vmatpush.msra.mxu0 0.0
    %569 = vmatpush.msra.mxu0 0.0
    %570 = vmatpush.msra.mxu0 0.0
    %571 = vmatpush.msra.mxu0 0.0
    %572 = vmatpush.msra.mxu0 0.0
    %573 = vmatpush.msra.mxu0 0.0
    %574 = vmatpush.msra.mxu0 0.0
    %575 = vmatpush.msra.mxu0 0.0
    %576 = vmatpush.msra.mxu0 0.0
    %577 = vmatpush.msra.mxu0 0.0
    %578 = vmatpush.msra.mxu0 0.0
    %579 = vmatpush.msra.mxu0 %v196
    %580 = vmatpush.msra.mxu0 %v195
    %581 = vmatpush.msra.mxu0 %v194
    %582 = vmatpush.msra.mxu0 %v193
    %583 = vmatmul.f32.gmra.mxu0 %v565
    %v584 = vpop.f32.mrf.mxu0
    %v585 = vadd.f32 0.0, %v584
    %586 = vdwg.mxu0
    %v588 = vrot.slane %v585, 2
    %v590 = vadd.f32 %v104, %v588
    %v591 = vxor.u32 %v590, 2147483648
    %v592 = vmul.f32 %v591, 1.442695
    %v593 = vpow.pop %v592
    %v594 = vadd.f32 %v593, 1.0
    %v595 = vrcp.pop %v594
    %v596 = vmul.f32 %v594, %v595
    %v597 = vsub.f32 1.0, %v596
    %v598 = vmul.f32 %v595, %v597
    %v599 = vadd.f32 %v595, %v598
    %vm600 = vweird.f32 %v594
    %vm601 = vweird.f32 %v595
    %vm602 = vmor %vm600, %vm601
    %v603 = vsel %vm602, %v595, %v599
    %v604 = vand.u32 2147483647, %v594
    %vm605 = vcmp.eq.f32.partialorder %v604, 8.507059e+37
    %v606 = vand.u32 %v594, 2147483648
    %v607 = vor.u32 1.1754944e-38, %v606
    %v608 = vsel %vm605, %v607, %v603
    %v609 = vmul.f32 1.0, %v608
    %610 = vmatpush.msra.mxu0 0.0
    %611 = vmatpush.msra.mxu0 0.0
    %612 = vmatpush.msra.mxu0 0.0
    %613 = vmatpush.msra.mxu0 0.0
    %614 = vmatpush.msra.mxu0 0.0
    %615 = vmatpush.msra.mxu0 0.0
    %616 = vmatpush.msra.mxu0 0.0
    %617 = vmatpush.msra.mxu0 0.0
    %618 = vmatpush.msra.mxu0 0.0
    %619 = vmatpush.msra.mxu0 0.0
    %620 = vmatpush.msra.mxu0 0.0
    %621 = vmatpush.msra.mxu0 0.0
    %622 = vmatpush.msra.mxu0 %v201
    %623 = vmatpush.msra.mxu0 %v200
    %624 = vmatpush.msra.mxu0 %v199
    %625 = vmatpush.msra.mxu0 %v198
    %626 = vmatmul.f32.gmra.mxu0 %v565
    %v627 = vpop.f32.mrf.mxu0
    %v628 = vadd.f32 0.0, %v627
    %629 = vdwg.mxu0
    %v631 = vrot.slane %v628, 2
    %v633 = vadd.f32 %v146, %v631
    %v634 = vxor.u32 %v633, 2147483648
    %v635 = vmul.f32 %v634, 1.442695
    %v636 = vpow.pop %v635
    %v637 = vadd.f32 %v636, 1.0
    %v638 = vrcp.pop %v637
    %v639 = vmul.f32 %v637, %v638
    %v640 = vsub.f32 1.0, %v639
    %v641 = vmul.f32 %v638, %v640
    %v642 = vadd.f32 %v638, %v641
    %vm643 = vweird.f32 %v637
    %vm644 = vweird.f32 %v638
    %vm645 = vmor %vm643, %vm644
    %v646 = vsel %vm645, %v638, %v642
    %v647 = vand.u32 2147483647, %v637
    %vm648 = vcmp.eq.f32.partialorder %v647, 8.507059e+37
    %v649 = vand.u32 %v637, 2147483648
    %v650 = vor.u32 1.1754944e-38, %v649
    %v651 = vsel %vm648, %v650, %v646
    %v652 = vmul.f32 1.0, %v651
    %653 = vmatpush.msra.mxu0 0.0
    %654 = vmatpush.msra.mxu0 0.0
    %655 = vmatpush.msra.mxu0 0.0
    %656 = vmatpush.msra.mxu0 0.0
    %657 = vmatpush.msra.mxu0 0.0
    %658 = vmatpush.msra.mxu0 0.0
    %659 = vmatpush.msra.mxu0 0.0
    %660 = vmatpush.msra.mxu0 0.0
    %661 = vmatpush.msra.mxu0 0.0
    %662 = vmatpush.msra.mxu0 0.0
    %663 = vmatpush.msra.mxu0 0.0
    %664 = vmatpush.msra.mxu0 0.0
    %665 = vmatpush.msra.mxu0 %v206
    %666 = vmatpush.msra.mxu0 %v205
    %667 = vmatpush.msra.mxu0 %v204
    %668 = vmatpush.msra.mxu0 %v203
    %669 = vmatmul.f32.gmra.mxu0 %v565
    %v670 = vpop.f32.mrf.mxu0
    %v671 = vadd.f32 %v292, %v670
    %672 = vdwg.mxu0
    %v674 = vrot.slane %v671, 2
    %v676 = vmul.f32 %v609, %v674
    %v677 = vadd.f32 %v188, %v676
    %v678 = vtanh.pop %v677
    %v679 = vsub.f32 1.0, %v652
    %v680 = vmul.f32 %v679, %v678
    %v681 = vrot.slane %v562, 6
    %v683 = vmul.f32 %v652, %v681
    %v684 = vadd.f32 %v680, %v683
    %v686 = vrot.slane %v684, 6
    %v687 = vsel %vm208, %v686, 0
    %689 = vmatpush.msra.mxu0 0.0
    %690 = vmatpush.msra.mxu0 0.0
    %691 = vmatpush.msra.mxu0 0.0
    %692 = vmatpush.msra.mxu0 0.0
    %693 = vmatpush.msra.mxu0 0.0
    %694 = vmatpush.msra.mxu0 0.0
    %695 = vmatpush.msra.mxu0 0.0
    %696 = vmatpush.msra.mxu0 0.0
    %697 = vmatpush.msra.mxu0 0.0
    %698 = vmatpush.msra.mxu0 0.0
    %699 = vmatpush.msra.mxu0 0.0
    %700 = vmatpush.msra.mxu0 0.0
    %701 = vmatpush.msra.mxu0 %v196
    %702 = vmatpush.msra.mxu0 %v195
    %703 = vmatpush.msra.mxu0 %v194
    %704 = vmatpush.msra.mxu0 %v193
    %705 = vmatmul.f32.gmra.mxu0 %v687
    %v706 = vpop.f32.mrf.mxu0
    %v707 = vadd.f32 0.0, %v706
    %708 = vdwg.mxu0
    %v709 = vadd.f32 %v107, %v707
    %v710 = vxor.u32 %v709, 2147483648
    %v711 = vmul.f32 %v710, 1.442695
    %v712 = vpow.pop %v711
    %v713 = vadd.f32 %v712, 1.0
    %v714 = vrcp.pop %v713
    %v715 = vmul.f32 %v713, %v714
    %v716 = vsub.f32 1.0, %v715
    %v717 = vmul.f32 %v714, %v716
    %v718 = vadd.f32 %v714, %v717
    %vm719 = vweird.f32 %v713
    %vm720 = vweird.f32 %v714
    %vm721 = vmor %vm719, %vm720
    %v722 = vsel %vm721, %v714, %v718
    %v723 = vand.u32 2147483647, %v713
    %vm724 = vcmp.eq.f32.partialorder %v723, 8.507059e+37
    %v725 = vand.u32 %v713, 2147483648
    %v726 = vor.u32 1.1754944e-38, %v725
    %v727 = vsel %vm724, %v726, %v722
    %v728 = vmul.f32 1.0, %v727
    %729 = vmatpush.msra.mxu0 0.0
    %730 = vmatpush.msra.mxu0 0.0
    %731 = vmatpush.msra.mxu0 0.0
    %732 = vmatpush.msra.mxu0 0.0
    %733 = vmatpush.msra.mxu0 0.0
    %734 = vmatpush.msra.mxu0 0.0
    %735 = vmatpush.msra.mxu0 0.0
    %736 = vmatpush.msra.mxu0 0.0
    %737 = vmatpush.msra.mxu0 0.0
    %738 = vmatpush.msra.mxu0 0.0
    %739 = vmatpush.msra.mxu0 0.0
    %740 = vmatpush.msra.mxu0 0.0
    %741 = vmatpush.msra.mxu0 %v201
    %742 = vmatpush.msra.mxu0 %v200
    %743 = vmatpush.msra.mxu0 %v199
    %744 = vmatpush.msra.mxu0 %v198
    %745 = vmatmul.f32.gmra.mxu0 %v687
    %v746 = vpop.f32.mrf.mxu0
    %v747 = vadd.f32 0.0, %v746
    %748 = vdwg.mxu0
    %v749 = vadd.f32 %v149, %v747
    %v750 = vxor.u32 %v749, 2147483648
    %v751 = vmul.f32 %v750, 1.442695
    %v752 = vpow.pop %v751
    %v753 = vadd.f32 %v752, 1.0
    %v754 = vrcp.pop %v753
    %v755 = vmul.f32 %v753, %v754
    %v756 = vsub.f32 1.0, %v755
    %v757 = vmul.f32 %v754, %v756
    %v758 = vadd.f32 %v754, %v757
    %vm759 = vweird.f32 %v753
    %vm760 = vweird.f32 %v754
    %vm761 = vmor %vm759, %vm760
    %v762 = vsel %vm761, %v754, %v758
    %v763 = vand.u32 2147483647, %v753
    %vm764 = vcmp.eq.f32.partialorder %v763, 8.507059e+37
    %v765 = vand.u32 %v753, 2147483648
    %v766 = vor.u32 1.1754944e-38, %v765
    %v767 = vsel %vm764, %v766, %v762
    %v768 = vmul.f32 1.0, %v767
    %769 = vmatpush.msra.mxu0 0.0
    %770 = vmatpush.msra.mxu0 0.0
    %771 = vmatpush.msra.mxu0 0.0
    %772 = vmatpush.msra.mxu0 0.0
    %773 = vmatpush.msra.mxu0 0.0
    %774 = vmatpush.msra.mxu0 0.0
    %775 = vmatpush.msra.mxu0 0.0
    %776 = vmatpush.msra.mxu0 0.0
    %777 = vmatpush.msra.mxu0 0.0
    %778 = vmatpush.msra.mxu0 0.0
    %779 = vmatpush.msra.mxu0 0.0
    %780 = vmatpush.msra.mxu0 0.0
    %781 = vmatpush.msra.mxu0 %v206
    %782 = vmatpush.msra.mxu0 %v205
    %783 = vmatpush.msra.mxu0 %v204
    %784 = vmatpush.msra.mxu0 %v203
    %785 = vmatmul.f32.gmra.mxu0 %v687
    %v786 = vpop.f32.mrf.mxu0
    %v787 = vadd.f32 %v292, %v786
    %788 = vdwg.mxu0
    %v789 = vmul.f32 %v728, %v787
    %v790 = vadd.f32 %v191, %v789
    %v791 = vtanh.pop %v790
    %v792 = vsub.f32 1.0, %v768
    %v793 = vmul.f32 %v792, %v791
    %v795 = vmul.f32 %v768, %v686
    %v796 = vadd.f32 %v793, %v795
    %v798 = vsel %vm208, %v796, 0
    %800 = vmatpush.msra.mxu0 0.0
    %801 = vmatpush.msra.mxu0 0.0
    %802 = vmatpush.msra.mxu0 0.0
    %803 = vmatpush.msra.mxu0 0.0
    %804 = vmatpush.msra.mxu0 0.0
    %805 = vmatpush.msra.mxu0 0.0
    %806 = vmatpush.msra.mxu0 0.0
    %807 = vmatpush.msra.mxu0 0.0
    %808 = vmatpush.msra.mxu0 0.0
    %809 = vmatpush.msra.mxu0 0.0
    %810 = vmatpush.msra.mxu0 0.0
    %811 = vmatpush.msra.mxu0 0.0
    %812 = vmatpush.msra.mxu0 %v196
    %813 = vmatpush.msra.mxu0 %v195
    %814 = vmatpush.msra.mxu0 %v194
    %815 = vmatpush.msra.mxu0 %v193
    %816 = vmatmul.f32.gmra.mxu0 %v798
    %v817 = vpop.f32.mrf.mxu0
    %v818 = vadd.f32 0.0, %v817
    %819 = vdwg.mxu0
    %v821 = vrot.slane %v818, 6
    %v823 = vadd.f32 %v107, %v821
    %v824 = vxor.u32 %v823, 2147483648
    %v825 = vmul.f32 %v824, 1.442695
    %v826 = vpow.pop %v825
    %v827 = vadd.f32 %v826, 1.0
    %v828 = vrcp.pop %v827
    %v829 = vmul.f32 %v827, %v828
    %v830 = vsub.f32 1.0, %v829
    %v831 = vmul.f32 %v828, %v830
    %v832 = vadd.f32 %v828, %v831
    %vm833 = vweird.f32 %v827
    %vm834 = vweird.f32 %v828
    %vm835 = vmor %vm833, %vm834
    %v836 = vsel %vm835, %v828, %v832
    %v837 = vand.u32 2147483647, %v827
    %vm838 = vcmp.eq.f32.partialorder %v837, 8.507059e+37
    %v839 = vand.u32 %v827, 2147483648
    %v840 = vor.u32 1.1754944e-38, %v839
    %v841 = vsel %vm838, %v840, %v836
    %v842 = vmul.f32 1.0, %v841
    %843 = vmatpush.msra.mxu0 0.0
    %844 = vmatpush.msra.mxu0 0.0
    %845 = vmatpush.msra.mxu0 0.0
    %846 = vmatpush.msra.mxu0 0.0
    %847 = vmatpush.msra.mxu0 0.0
    %848 = vmatpush.msra.mxu0 0.0
    %849 = vmatpush.msra.mxu0 0.0
    %850 = vmatpush.msra.mxu0 0.0
    %851 = vmatpush.msra.mxu0 0.0
    %852 = vmatpush.msra.mxu0 0.0
    %853 = vmatpush.msra.mxu0 0.0
    %854 = vmatpush.msra.mxu0 0.0
    %855 = vmatpush.msra.mxu0 %v201
    %856 = vmatpush.msra.mxu0 %v200
    %857 = vmatpush.msra.mxu0 %v199
    %858 = vmatpush.msra.mxu0 %v198
    %859 = vmatmul.f32.gmra.mxu0 %v798
    %v860 = vpop.f32.mrf.mxu0
    %v861 = vadd.f32 0.0, %v860
    %862 = vdwg.mxu0
    %v864 = vrot.slane %v861, 6
    %v866 = vadd.f32 %v149, %v864
    %v867 = vxor.u32 %v866, 2147483648
    %v868 = vmul.f32 %v867, 1.442695
    %v869 = vpow.pop %v868
    %v870 = vadd.f32 %v869, 1.0
    %v871 = vrcp.pop %v870
    %v872 = vmul.f32 %v870, %v871
    %v873 = vsub.f32 1.0, %v872
    %v874 = vmul.f32 %v871, %v873
    %v875 = vadd.f32 %v871, %v874
    %vm876 = vweird.f32 %v870
    %vm877 = vweird.f32 %v871
    %vm878 = vmor %vm876, %vm877
    %v879 = vsel %vm878, %v871, %v875
    %v880 = vand.u32 2147483647, %v870
    %vm881 = vcmp.eq.f32.partialorder %v880, 8.507059e+37
    %v882 = vand.u32 %v870, 2147483648
    %v883 = vor.u32 1.1754944e-38, %v882
    %v884 = vsel %vm881, %v883, %v879
    %v885 = vmul.f32 1.0, %v884
    %886 = vmatpush.msra.mxu0 0.0
    %887 = vmatpush.msra.mxu0 0.0
    %888 = vmatpush.msra.mxu0 0.0
    %889 = vmatpush.msra.mxu0 0.0
    %890 = vmatpush.msra.mxu0 0.0
    %891 = vmatpush.msra.mxu0 0.0
    %892 = vmatpush.msra.mxu0 0.0
    %893 = vmatpush.msra.mxu0 0.0
    %894 = vmatpush.msra.mxu0 0.0
    %895 = vmatpush.msra.mxu0 0.0
    %896 = vmatpush.msra.mxu0 0.0
    %897 = vmatpush.msra.mxu0 0.0
    %898 = vmatpush.msra.mxu0 %v206
    %899 = vmatpush.msra.mxu0 %v205
    %900 = vmatpush.msra.mxu0 %v204
    %901 = vmatpush.msra.mxu0 %v203
    %902 = vmatmul.f32.gmra.mxu0 %v798
    %v903 = vpop.f32.mrf.mxu0
    %v904 = vadd.f32 %v292, %v903
    %905 = vdwg.mxu0
    %v907 = vrot.slane %v904, 6
    %v909 = vmul.f32 %v842, %v907
    %v910 = vadd.f32 %v191, %v909
    %v911 = vtanh.pop %v910
    %v912 = vsub.f32 1.0, %v885
    %v913 = vmul.f32 %v912, %v911
    %v914 = vrot.slane %v796, 6
    %v916 = vmul.f32 %v885, %v914
    %v917 = vadd.f32 %v913, %v916
    %v919 = vrot.slane %v917, 2
    %v920 = vsel %vm208, %v919, 0
    %922 = vmatpush.msra.mxu0 0.0
    %923 = vmatpush.msra.mxu0 0.0
    %924 = vmatpush.msra.mxu0 0.0
    %925 = vmatpush.msra.mxu0 0.0
    %926 = vmatpush.msra.mxu0 0.0
    %927 = vmatpush.msra.mxu0 0.0
    %928 = vmatpush.msra.mxu0 0.0
    %929 = vmatpush.msra.mxu0 0.0
    %930 = vmatpush.msra.mxu0 0.0
    %931 = vmatpush.msra.mxu0 0.0
    %932 = vmatpush.msra.mxu0 0.0
    %933 = vmatpush.msra.mxu0 0.0
    %934 = vmatpush.msra.mxu0 %v196
    %935 = vmatpush.msra.mxu0 %v195
    %936 = vmatpush.msra.mxu0 %v194
    %937 = vmatpush.msra.mxu0 %v193
    %938 = vmatmul.f32.gmra.mxu0 %v920
    %v939 = vpop.f32.mrf.mxu0
    %v940 = vadd.f32 0.0, %v939
    %941 = vdwg.mxu0
    %v943 = vrot.slane %v940, 4
    %v945 = vadd.f32 %v107, %v943
    %v946 = vxor.u32 %v945, 2147483648
    %v947 = vmul.f32 %v946, 1.442695
    %v948 = vpow.pop %v947
    %v949 = vadd.f32 %v948, 1.0
    %v950 = vrcp.pop %v949
    %v951 = vmul.f32 %v949, %v950
    %v952 = vsub.f32 1.0, %v951
    %v953 = vmul.f32 %v950, %v952
    %v954 = vadd.f32 %v950, %v953
    %vm955 = vweird.f32 %v949
    %vm956 = vweird.f32 %v950
    %vm957 = vmor %vm955, %vm956
    %v958 = vsel %vm957, %v950, %v954
    %v959 = vand.u32 2147483647, %v949
    %vm960 = vcmp.eq.f32.partialorder %v959, 8.507059e+37
    %v961 = vand.u32 %v949, 2147483648
    %v962 = vor.u32 1.1754944e-38, %v961
    %v963 = vsel %vm960, %v962, %v958
    %v964 = vmul.f32 1.0, %v963
    %965 = vmatpush.msra.mxu0 0.0
    %966 = vmatpush.msra.mxu0 0.0
    %967 = vmatpush.msra.mxu0 0.0
    %968 = vmatpush.msra.mxu0 0.0
    %969 = vmatpush.msra.mxu0 0.0
    %970 = vmatpush.msra.mxu0 0.0
    %971 = vmatpush.msra.mxu0 0.0
    %972 = vmatpush.msra.mxu0 0.0
    %973 = vmatpush.msra.mxu0 0.0
    %974 = vmatpush.msra.mxu0 0.0
    %975 = vmatpush.msra.mxu0 0.0
    %976 = vmatpush.msra.mxu0 0.0
    %977 = vmatpush.msra.mxu0 %v201
    %978 = vmatpush.msra.mxu0 %v200
    %979 = vmatpush.msra.mxu0 %v199
    %980 = vmatpush.msra.mxu0 %v198
    %981 = vmatmul.f32.gmra.mxu0 %v920
    %v982 = vpop.f32.mrf.mxu0
    %v983 = vadd.f32 0.0, %v982
    %984 = vdwg.mxu0
    %v986 = vrot.slane %v983, 4
    %v988 = vadd.f32 %v149, %v986
    %v989 = vxor.u32 %v988, 2147483648
    %v990 = vmul.f32 %v989, 1.442695
    %v991 = vpow.pop %v990
    %v992 = vadd.f32 %v991, 1.0
    %v993 = vrcp.pop %v992
    %v994 = vmul.f32 %v992, %v993
    %v995 = vsub.f32 1.0, %v994
    %v996 = vmul.f32 %v993, %v995
    %v997 = vadd.f32 %v993, %v996
    %vm998 = vweird.f32 %v992
    %vm999 = vweird.f32 %v993
    %vm1000 = vmor %vm998, %vm999
    %v1001 = vsel %vm1000, %v993, %v997
    %v1002 = vand.u32 2147483647, %v992
    %vm1003 = vcmp.eq.f32.partialorder %v1002, 8.507059e+37
    %v1004 = vand.u32 %v992, 2147483648
    %v1005 = vor.u32 1.1754944e-38, %v1004
    %v1006 = vsel %vm1003, %v1005, %v1001
    %v1007 = vmul.f32 1.0, %v1006
    %1008 = vmatpush.msra.mxu0 0.0
    %1009 = vmatpush.msra.mxu0 0.0
    %1010 = vmatpush.msra.mxu0 0.0
    %1011 = vmatpush.msra.mxu0 0.0
    %1012 = vmatpush.msra.mxu0 0.0
    %1013 = vmatpush.msra.mxu0 0.0
    %1014 = vmatpush.msra.mxu0 0.0
    %1015 = vmatpush.msra.mxu0 0.0
    %1016 = vmatpush.msra.mxu0 0.0
    %1017 = vmatpush.msra.mxu0 0.0
    %1018 = vmatpush.msra.mxu0 0.0
    %1019 = vmatpush.msra.mxu0 0.0
    %1020 = vmatpush.msra.mxu0 %v206
    %1021 = vmatpush.msra.mxu0 %v205
    %1022 = vmatpush.msra.mxu0 %v204
    %1023 = vmatpush.msra.mxu0 %v203
    %1024 = vmatmul.f32.gmra.mxu0 %v920
    %v1025 = vpop.f32.mrf.mxu0
    %v1026 = vadd.f32 %v292, %v1025
    %1027 = vdwg.mxu0
    %v1029 = vrot.slane %v1026, 4
    %v1031 = vmul.f32 %v964, %v1029
    %v1032 = vadd.f32 %v191, %v1031
    %v1033 = vtanh.pop %v1032
    %v1034 = vsub.f32 1.0, %v1007
    %v1035 = vmul.f32 %v1034, %v1033
    %v1036 = vrot.slane %v917, 6
    %v1038 = vmul.f32 %v1007, %v1036
    %v1039 = vadd.f32 %v1035, %v1038
    %v1041 = vrot.slane %v1039, 4
    %v1042 = vsel %vm208, %v1041, 0
    %1044 = vmatpush.msra.mxu0 0.0
    %1045 = vmatpush.msra.mxu0 0.0
    %1046 = vmatpush.msra.mxu0 0.0
    %1047 = vmatpush.msra.mxu0 0.0
    %1048 = vmatpush.msra.mxu0 0.0
    %1049 = vmatpush.msra.mxu0 0.0
    %1050 = vmatpush.msra.mxu0 0.0
    %1051 = vmatpush.msra.mxu0 0.0
    %1052 = vmatpush.msra.mxu0 0.0
    %1053 = vmatpush.msra.mxu0 0.0
    %1054 = vmatpush.msra.mxu0 0.0
    %1055 = vmatpush.msra.mxu0 0.0
    %1056 = vmatpush.msra.mxu0 %v196
    %1057 = vmatpush.msra.mxu0 %v195
    %1058 = vmatpush.msra.mxu0 %v194
    %1059 = vmatpush.msra.mxu0 %v193
    %1060 = vmatmul.f32.gmra.mxu0 %v1042
    %v1061 = vpop.f32.mrf.mxu0
    %v1062 = vadd.f32 0.0, %v1061
    %1063 = vdwg.mxu0
    %v1065 = vrot.slane %v1062, 2
    %v1067 = vadd.f32 %v107, %v1065
    %v1068 = vxor.u32 %v1067, 2147483648
    %v1069 = vmul.f32 %v1068, 1.442695
    %v1070 = vpow.pop %v1069
    %v1071 = vadd.f32 %v1070, 1.0
    %v1072 = vrcp.pop %v1071
    %v1073 = vmul.f32 %v1071, %v1072
    %v1074 = vsub.f32 1.0, %v1073
    %v1075 = vmul.f32 %v1072, %v1074
    %v1076 = vadd.f32 %v1072, %v1075
    %vm1077 = vweird.f32 %v1071
    %vm1078 = vweird.f32 %v1072
    %vm1079 = vmor %vm1077, %vm1078
    %v1080 = vsel %vm1079, %v1072, %v1076
    %v1081 = vand.u32 2147483647, %v1071
    %vm1082 = vcmp.eq.f32.partialorder %v1081, 8.507059e+37
    %v1083 = vand.u32 %v1071, 2147483648
    %v1084 = vor.u32 1.1754944e-38, %v1083
    %v1085 = vsel %vm1082, %v1084, %v1080
    %v1086 = vmul.f32 1.0, %v1085
    %1087 = vmatpush.msra.mxu0 0.0
    %1088 = vmatpush.msra.mxu0 0.0
    %1089 = vmatpush.msra.mxu0 0.0
    %1090 = vmatpush.msra.mxu0 0.0
    %1091 = vmatpush.msra.mxu0 0.0
    %1092 = vmatpush.msra.mxu0 0.0
    %1093 = vmatpush.msra.mxu0 0.0
    %1094 = vmatpush.msra.mxu0 0.0
    %1095 = vmatpush.msra.mxu0 0.0
    %1096 = vmatpush.msra.mxu0 0.0
    %1097 = vmatpush.msra.mxu0 0.0
    %1098 = vmatpush.msra.mxu0 0.0
    %1099 = vmatpush.msra.mxu0 %v201
    %1100 = vmatpush.msra.mxu0 %v200
    %1101 = vmatpush.msra.mxu0 %v199
    %1102 = vmatpush.msra.mxu0 %v198
    %1103 = vmatmul.f32.gmra.mxu0 %v1042
    %v1104 = vpop.f32.mrf.mxu0
    %v1105 = vadd.f32 0.0, %v1104
    %1106 = vdwg.mxu0
    %v1108 = vrot.slane %v1105, 2
    %v1110 = vadd.f32 %v149, %v1108
    %v1111 = vxor.u32 %v1110, 2147483648
    %v1112 = vmul.f32 %v1111, 1.442695
    %v1113 = vpow.pop %v1112
    %v1114 = vadd.f32 %v1113, 1.0
    %v1115 = vrcp.pop %v1114
    %v1116 = vmul.f32 %v1114, %v1115
    %v1117 = vsub.f32 1.0, %v1116
    %v1118 = vmul.f32 %v1115, %v1117
    %v1119 = vadd.f32 %v1115, %v1118
    %vm1120 = vweird.f32 %v1114
    %vm1121 = vweird.f32 %v1115
    %vm1122 = vmor %vm1120, %vm1121
    %v1123 = vsel %vm1122, %v1115, %v1119
    %v1124 = vand.u32 2147483647, %v1114
    %vm1125 = vcmp.eq.f32.partialorder %v1124, 8.507059e+37
    %v1126 = vand.u32 %v1114, 2147483648
    %v1127 = vor.u32 1.1754944e-38, %v1126
    %v1128 = vsel %vm1125, %v1127, %v1123
    %v1129 = vmul.f32 1.0, %v1128
    %1130 = vmatpush.msra.mxu0 0.0
    %1131 = vmatpush.msra.mxu0 0.0
    %1132 = vmatpush.msra.mxu0 0.0
    %1133 = vmatpush.msra.mxu0 0.0
    %1134 = vmatpush.msra.mxu0 0.0
    %1135 = vmatpush.msra.mxu0 0.0
    %1136 = vmatpush.msra.mxu0 0.0
    %1137 = vmatpush.msra.mxu0 0.0
    %1138 = vmatpush.msra.mxu0 0.0
    %1139 = vmatpush.msra.mxu0 0.0
    %1140 = vmatpush.msra.mxu0 0.0
    %1141 = vmatpush.msra.mxu0 0.0
    %1142 = vmatpush.msra.mxu0 %v206
    %1143 = vmatpush.msra.mxu0 %v205
    %1144 = vmatpush.msra.mxu0 %v204
    %1145 = vmatpush.msra.mxu0 %v203
    %1146 = vmatmul.f32.gmra.mxu0 %v1042
    %v1147 = vpop.f32.mrf.mxu0
    %v1148 = vadd.f32 %v292, %v1147
    %1149 = vdwg.mxu0
    %v1151 = vrot.slane %v1148, 2
    %v1153 = vmul.f32 %v1086, %v1151
    %v1154 = vadd.f32 %v191, %v1153
    %v1155 = vtanh.pop %v1154
    %v1156 = vsub.f32 1.0, %v1129
    %v1157 = vmul.f32 %v1156, %v1155
    %v1158 = vrot.slane %v1039, 6
    %v1160 = vmul.f32 %v1129, %v1158
    %v1161 = vadd.f32 %v1157, %v1160
    %vm1162 = vcmask 1041408
    %v1163 = vsel %vm1162, %v319, %v440
    %vm1164 = vcmask 1043456
    %v1165 = vsel %vm1164, %v1163, %v562
    %vm1166 = vcmask 1045504
    %v1167 = vsel %vm1166, %v1165, %v684
    %v1168 = vsel %vm1162, %v796, %v917
    %v1169 = vsel %vm1164, %v1168, %v1039
    %v1170 = vsel %vm1166, %v1169, %v1161
    %v1171 = vld [vmem:[%s5] sm:$0xff]
    %v1172 = vld [vmem:[%s5 + $0x8] sm:$0xff]
    %v1173 = vld [vmem:[%s5 + $0x10] sm:$0xff]
    %v1174 = vld [vmem:[%s5 + $0x18] sm:$0xff]
    %v1175 = vld [vmem:[%s6] sm:$0x1]
    %v1177 = vperm.slane %v1175, 0
    %v1180 = vsel %vm208, %v1167, 0
    %v1183 = vsel %vm208, %v1170, 0
    %1185 = vmatpush.msra.mxu0 0.0
    %1186 = vmatpush.msra.mxu0 0.0
    %1187 = vmatpush.msra.mxu0 0.0
    %1188 = vmatpush.msra.mxu0 0.0
    %1189 = vmatpush.msra.mxu0 0.0
    %1190 = vmatpush.msra.mxu0 0.0
    %1191 = vmatpush.msra.mxu0 0.0
    %1192 = vmatpush.msra.mxu0 0.0
    %1193 = vmatpush.msra.mxu0 0.0
    %1194 = vmatpush.msra.mxu0 0.0
    %1195 = vmatpush.msra.mxu0 0.0
    %1196 = vmatpush.msra.mxu0 0.0
    %1197 = vmatpush.msra.mxu0 %v1174
    %1198 = vmatpush.msra.mxu0 %v1173
    %1199 = vmatpush.msra.mxu0 %v1172
    %1200 = vmatpush.msra.mxu0 %v1171
    %1201 = vmatmul.f32.gmra.mxu0 %v1180
    %v1202 = vpop.f32.mrf.mxu0
    %v1203 = vadd.f32 %v1177, %v1202
    %1204 = vmatmul.f32.gmra.mxu0 %v1183
    %v1205 = vpop.f32.mrf.mxu0
    %v1206 = vadd.f32 %v1177, %v1205
    %1207 = vdwg.mxu0
    %1208 = vst [vmem:[#allocation2] sm:$0xff] %v1203
    %1209 = vst [vmem:[#allocation2 + $0x8] sm:$0xff] %v1206
    // Predicated region
    $region30: #{tpu_custom_call.1} parent=1 // pred_check
      _
    $region31: #{tpu_custom_call.1} parent=1 // pred_check_branch
      %1211 = sbr.rel (0) target = $region33
    $region32: #{tpu_custom_call.1} parent=1 // pred_region
      %1213 = vsyncadd [#allocation3], 0
      %s1214 = sshll.u32 [#allocation2], 4
      %s1215 = int_to_ptr.vmem [resolvable:$true] %s1214
      %s1216 = sshll.u32 %s7, 4
      %s1217 = int_to_ptr.hbm [resolvable:$true] %s1216
      %1222 = dma.vmem_to_hbm [thread:$0]  %s1215, 256, %s1217, [#allocation3], 128, 128, 8
    $region33: #{tpu_custom_call.1} parent=1 // pred_fallthru
      _
    // Predicated region
    $region34: #{tpu_custom_call.1} parent=1 // pred_check
      _
    $region35: #{tpu_custom_call.1} parent=1 // pred_check_branch
      %1224 = sbr.rel (0) target = $region37
    $region36: #{tpu_custom_call.1} parent=1 // pred_region
      %1226 = dma.done [#allocation3], 256
    $region37: #{tpu_custom_call.1} parent=1 // pred_fallthru
      _
    %1227 = vsyncpa [#allocation3], 1

</llo_original>
